<compile_context>
chip_gen: v6e
topology: v6e:2x2x1
jax: 0.10.0
libtpu: 0.0.40
codegen_flags: <defaults>
</compile_context>

<pallas_src>
import jax
import jax.numpy as jnp
import numpy as np
from jax.experimental import pallas as pl
from jax.experimental.pallas import tpu as pltpu


def _transformer2d_kernel(
    q_ref, k_ref, pos_ref,
    ga_ref, bta_ref,                 # attn_norm gamma/beta           (1, D)  f32
    wqa_ref,                         # wq @ wa1                       (D, Hp) bf16
    wka_ref,                         # wk @ wa1                       (D, Hp) bf16
    wkv_ref,                         # wk @ wv                        (D, D)  bf16
    wp1_ref, bp1_ref,                # pos_fc layer-1                 (P, Hp) bf16, (1, Hp) f32
    wpa_ref, bap_ref,                # wp2 @ wa1, bp2@wa1 + ba1       (Hp,Hp) bf16, (1, Hp) f32
    wp2_ref, bp2_ref,                # pos_fc layer-2                 (Hp, D) bf16, (1, D)  f32
    wa2_ref, ba2_ref,                # attn_fc layer-2                (Hp, D) bf16, (1, D)  f32
    wo_ref, bo_ref,                  # out_fc                         (D, D)  bf16, (1, D)  f32
    gf_ref, btf_ref,                 # ff_norm gamma/beta             (1, D)  f32
    wf1_ref, bf1_ref,                # ff layer-1                     (D, F)  bf16, (1, F)  f32
    wf2_ref, bf2_ref,                # ff layer-2                     (F, D)  bf16, (1, D)  f32
    out_ref,
):
    R, M, D = k_ref.shape
    P = pos_ref.shape[-1]
    f32 = jnp.float32
    bf16 = jnp.bfloat16

    # ---- attn_norm (LayerNorm, eps=1e-6) on q; q_fc folded through attn_fc L1
    q = q_ref[...]                                            # (R, D) f32
    mu = jnp.mean(q, axis=-1, keepdims=True)
    qc = q - mu
    var = jnp.mean(qc * qc, axis=-1, keepdims=True)
    qn = qc * jax.lax.rsqrt(var + 1e-6) * ga_ref[...] + bta_ref[...]
    aq = jnp.dot(qn.astype(bf16), wqa_ref[...], preferred_element_type=f32)   # (R, Hp)

    # ---- in-kernel bf16 staging of the big activations (f32 arrives via DMA) -
    k2b = k_ref[...].reshape(R * M, D).astype(bf16)           # (R*M, D)
    pos2b = pos_ref[...].reshape(R * M, P).astype(bf16)       # (R*M, P)

    # ---- pos_fc layer-1: tiny K=4 contraction on the MXU ---------------------
    ph = jnp.dot(pos2b, wp1_ref[...], preferred_element_type=f32) + bp1_ref[...]
    ph = jnp.maximum(ph, 0.0)                                 # (R*M, Hp) lane-dense
    phb = ph.astype(bf16)

    # ---- phase 1: attention logits + softmax (v / pf not yet live) -----------
    ak = jnp.dot(k2b, wka_ref[...], preferred_element_type=f32)               # (R*M, Hp)
    ap = jnp.dot(phb, wpa_ref[...], preferred_element_type=f32) + bap_ref[...]
    ah = (ak + ap).reshape(R, M, -1) - aq[:, None, :]
    ah = jnp.maximum(ah, 0.0).reshape(R * M, -1)
    attn = jnp.dot(ah.astype(bf16), wa2_ref[...], preferred_element_type=f32) + ba2_ref[...]
    attn = attn.reshape(R, M, D)

    # softmax over the M axis (torch dim=-2)
    attn = attn - jnp.max(attn, axis=1, keepdims=True)
    attn = jnp.exp(attn)
    denom = jnp.sum(attn, axis=1, keepdims=True)
    attn = attn * pl.reciprocal(denom, approx=True)

    # ---- phase 2: values, produced right before use ---------------------------
    v = jnp.dot(k2b, wkv_ref[...], preferred_element_type=f32)                # (R*M, D)
    pf = jnp.dot(phb, wp2_ref[...], preferred_element_type=f32) + bp2_ref[...]
    x = jnp.sum((v + pf).reshape(R, M, D) * attn, axis=1)                     # (R, D)

    # ---- out_fc + residual ----------------------------------------------------
    x1 = jnp.dot(x.astype(bf16), wo_ref[...], preferred_element_type=f32) + bo_ref[...] + q

    # ---- ff_norm + FeedForward + residual -------------------------------------
    mu2 = jnp.mean(x1, axis=-1, keepdims=True)
    xc = x1 - mu2
    var2 = jnp.mean(xc * xc, axis=-1, keepdims=True)
    xn = xc * jax.lax.rsqrt(var2 + 1e-6) * gf_ref[...] + btf_ref[...]
    fh = jnp.maximum(
        jnp.dot(xn.astype(bf16), wf1_ref[...], preferred_element_type=f32) + bf1_ref[...], 0.0)
    ff = jnp.dot(fh.astype(bf16), wf2_ref[...], preferred_element_type=f32) + bf2_ref[...]

    out_ref[...] = (ff + x1).astype(out_ref.dtype)


def fuse_params(params):
    """One-time weight fusion + lane padding (wrapper side).

    q_fc / k_fc are folded through attn_fc layer-1 (wq@wa1, wk@wa1), v_fc through
    k_fc (wk@wv) and pos_fc layer-2 through attn_fc layer-1 (wp2@wa1), so the
    kernel never materialises the big (rows*M, D) "k - q + pos" tensor.
    h = dim//8 is zero-padded to a 128-lane multiple; matmul weights -> bf16.
    """
    (ga, bta, wq, wk, wv, wp1, bp1, wp2, bp2, wa1, ba1, wa2, ba2,
     wo, bo, gf, btf, wf1, bf1, wf2, bf2) = params
    bf16 = jnp.bfloat16
    h = wa1.shape[1]
    Hp = ((h + 127) // 128) * 128

    def pad_c(w):  # pad last dim h -> Hp with zeros
        return jnp.pad(w, ((0, 0), (0, Hp - w.shape[1])))

    def pad_r(w):  # pad first dim h -> Hp with zeros
        return jnp.pad(w, ((0, Hp - w.shape[0]), (0, 0)))

    wa1p = pad_c(wa1)                                   # (D, Hp)
    wqa = (wq @ wa1p).astype(bf16)                      # (D, Hp)
    wka = (wk @ wa1p).astype(bf16)                      # (D, Hp)
    wkv = (wk @ wv).astype(bf16)                        # (D, D)
    wp1p = pad_c(wp1).astype(bf16)                      # (P, Hp)
    bp1p = pad_c(bp1)                                   # (1, Hp)
    wpa = pad_r(wp2 @ wa1p).astype(bf16)                # (Hp, Hp)
    bap = pad_c(bp2 @ wa1 + ba1)                        # (1, Hp)
    wp2p = pad_r(wp2).astype(bf16)                      # (Hp, D)
    wa2p = pad_r(wa2).astype(bf16)                      # (Hp, D)

    fused = (
        ga, bta,
        wqa, wka, wkv,
        wp1p, bp1p,
        wpa, bap,
        wp2p, bp2,
        wa2p, ba2,
        wo.astype(bf16), bo,
        gf, btf,
        wf1.astype(bf16), bf1,
        wf2.astype(bf16), bf2,
    )
    return fused, Hp


def _plan_tiles(rows, M, D, P, F, Hp, weight_bytes, requested):
    """Pick row tile R, grid steps and an explicit scoped-VMEM limit that fits
    v5e/v6e (128 MiB physical) and v7x (64 MiB physical)."""
    try:
        phys = int(pltpu.get_tpu_info().vmem_capacity_bytes)
    except Exception:
        phys = 64 * 1024 * 1024          # v7x-safe fallback

    Dl = ((D + 127) // 128) * 128
    Fl = ((F + 127) // 128) * 128
    Ms = ((M + 7) // 8) * 8

    def step_bytes(r):
        b = 0
        b += 2 * r * Dl * 4              # q blocks (double-buffered)
        b += 2 * r * Ms * Dl * 4         # k blocks (f32)
        b += 2 * r * Ms * 128 * 4        # pos blocks (lane-padded 4 -> 128)
        b += 2 * r * Dl * 4              # out blocks
        b += r * M * Dl * 2              # k bf16 staging
        b += 5 * r * M * Dl * 4          # logits / exp / attn / v+pf / product
        b += 4 * r * M * Hp * 4          # ak, ap, ah, ph
        b += 2 * r * M * Hp * 2          # bf16 stagings of ph / ah
        b += 12 * r * Dl * 4             # (r, D) temporaries
        b += 2 * r * Fl * 4              # feed-forward hidden
        return b

    budget = int(phys * 0.7) - 2 * weight_bytes - (4 << 20)
    budget = max(budget, 2 << 20)

    r_cap = max(8, (min(max(requested, 8), max(rows, 8)) // 8) * 8)
    while r_cap > 8 and step_bytes(r_cap) > budget:
        r_cap -= 8

    min_steps = 2 if rows >= 16 else 1   # let the "parallel" axis span 2 TCs (v7x)
    r_cap = min(r_cap, ((-(-rows // min_steps)) + 7) // 8 * 8)
    r_cap = max(r_cap, 8)

    r = r_cap
    for cand in range(r_cap, 7, -8):     # prefer R | rows: no pad / output slice
        if rows % cand == 0:
            r = cand
            break

    nsteps = max(-(-rows // r), 1)
    need = step_bytes(r) + 2 * weight_bytes + (2 << 20)
    vmem_limit = min(phys - (2 << 20), max(48 << 20, need + (16 << 20)))
    vmem_limit = max(vmem_limit, 16 << 20)
    return r, nsteps, int(vmem_limit)


def transformer2d_pallas(q, k, pos, params, *, row_tile=256):
    """q: (B, N, D), k: (B, N, M, D), pos: (B, N, M, 4) -> (B, N, D)."""
    B, N, D = q.shape
    M = k.shape[2]
    P = pos.shape[-1]
    F = params[17].shape[-1]             # wf1: (D, F)
    rows = B * N

    fused, Hp = fuse_params(params)
    weight_bytes = int(sum(int(w.size) * w.dtype.itemsize for w in fused))
    R, nsteps, vmem_limit = _plan_tiles(rows, M, D, P, F, Hp, weight_bytes, row_tile)
    rows_p = R * nsteps

    q2 = q.reshape(rows, D)
    k3 = k.reshape(rows, M, D)           # stays f32: cast happens in-kernel
    p3 = pos.reshape(rows, M, P)
    if rows_p != rows:                   # fallback only; R is normally a divisor
        pad = rows_p - rows
        q2 = jnp.pad(q2, ((0, pad), (0, 0)))
        k3 = jnp.pad(k3, ((0, pad), (0, 0), (0, 0)))
        p3 = jnp.pad(p3, ((0, pad), (0, 0), (0, 0)))

    def const_spec(w):
        nd = w.ndim
        return pl.BlockSpec(w.shape, lambda i, _nd=nd: (0,) * _nd)

    flops = 2 * rows * (
        D * Hp + M * D * Hp + M * P * Hp + M * Hp * Hp + M * Hp * D
        + M * D * D + M * Hp * D + D * D + 2 * D * F)
    bytes_accessed = 4 * (rows * D * 2 + rows * M * D + rows * M * P) + weight_bytes
    cost = pl.CostEstimate(flops=int(flops),
                           transcendentals=int(rows * M * D),
                           bytes_accessed=int(bytes_accessed))

    out = pl.pallas_call(
        _transformer2d_kernel,
        out_shape=jax.ShapeDtypeStruct((rows_p, D), q.dtype),
        grid_spec=pltpu.PrefetchScalarGridSpec(
            num_scalar_prefetch=0,
            grid=(nsteps,),
            in_specs=[
                pl.BlockSpec((R, D), lambda i: (i, 0)),        # q   f32
                pl.BlockSpec((R, M, D), lambda i: (i, 0, 0)),  # k   f32
                pl.BlockSpec((R, M, P), lambda i: (i, 0, 0)),  # pos f32
            ] + [const_spec(w) for w in fused],
            out_specs=pl.BlockSpec((R, D), lambda i: (i, 0)),
        ),
        compiler_params=pltpu.CompilerParams(
            dimension_semantics=("parallel",),
            vmem_limit_bytes=int(vmem_limit),
        ),
        cost_estimate=cost,
    )(q2, k3, p3, *fused)

    if rows_p != rows:
        out = out[:rows]
    return out.reshape(B, N, D)


def transformer2d_ref(q, k, pos, params):
    """Pure-JAX f32 reference mirroring the PyTorch forward (dropout = identity)."""
    (ga, bta, wq, wk, wv, wp1, bp1, wp2, bp2, wa1, ba1, wa2, ba2,
     wo, bo, gf, btf, wf1, bf1, wf2, bf2) = params

    def ln(x, g, b):
        mu = jnp.mean(x, axis=-1, keepdims=True)
        var = jnp.mean((x - mu) ** 2, axis=-1, keepdims=True)
        return (x - mu) / jnp.sqrt(var + 1e-6) * g[0] + b[0]

    residue = q
    xq = ln(q, ga, bta)
    qf = xq @ wq
    kf = k @ wk
    vf = kf @ wv
    pf = jnp.maximum(pos @ wp1 + bp1[0], 0.0) @ wp2 + bp2[0]
    attn = kf - qf[:, :, None, :] + pf
    attn = jnp.maximum(attn @ wa1 + ba1[0], 0.0) @ wa2 + ba2[0]
    attn = jax.nn.softmax(attn, axis=-2)
    xa = jnp.sum((vf + pf) * attn, axis=2)
    xa = xa @ wo + bo[0]
    x = xa + residue
    residue = x
    xn = ln(x, gf, btf)
    ff = jnp.maximum(xn @ wf1 + bf1[0], 0.0) @ wf2 + bf2[0]
    return ff + residue


def make_params(key, dim, ff_hid_dim):
    """Deterministic synthetic parameters. Linear weights stored transposed
    ([in, out]) so the kernel computes x @ W (== torch's x @ W.T)."""
    h = dim // 8
    keys = jax.random.split(key, 21)

    def w(kk, shape, scale):
        return jax.random.normal(kk, shape, jnp.float32) * scale

    ga = jnp.ones((1, dim), jnp.float32) + w(keys[0], (1, dim), 0.05)
    bta = w(keys[1], (1, dim), 0.05)
    wq = w(keys[2], (dim, dim), 0.08)
    wk = w(keys[3], (dim, dim), 0.08)
    wv = w(keys[4], (dim, dim), 0.08)
    wp1 = w(keys[5], (4, h), 0.3)
    bp1 = w(keys[6], (1, h), 0.1)
    wp2 = w(keys[7], (h, dim), 0.3)
    bp2 = w(keys[8], (1, dim), 0.1)
    wa1 = w(keys[9], (dim, h), 0.15)
    ba1 = w(keys[10], (1, h), 0.1)
    wa2 = w(keys[11], (h, dim), 0.3)
    ba2 = w(keys[12], (1, dim), 0.1)
    wo = w(keys[13], (dim, dim), 0.08)
    bo = w(keys[14], (1, dim), 0.1)
    gf = jnp.ones((1, dim), jnp.float32) + w(keys[15], (1, dim), 0.05)
    btf = w(keys[16], (1, dim), 0.05)
    wf1 = w(keys[17], (dim, ff_hid_dim), 0.15)
    bf1 = w(keys[18], (1, ff_hid_dim), 0.1)
    wf2 = w(keys[19], (ff_hid_dim, dim), 0.1)
    bf2 = w(keys[20], (1, dim), 0.1)
    return (ga, bta, wq, wk, wv, wp1, bp1, wp2, bp2, wa1, ba1, wa2, ba2,
            wo, bo, gf, btf, wf1, bf1, wf2, bf2)


if __name__ == "__main__":
    B, N, M, D, F = 2, 8, 8, 32, 64   # dim=32 -> dim//8=4, ff_hid_dim=64
    key = jax.random.PRNGKey(0)
    kq, kk, kp, kw = jax.random.split(key, 4)

    q = jax.random.normal(kq, (B, N, D), jnp.float32)
    k = jax.random.normal(kk, (B, N, M, D), jnp.float32)
    pos = jax.random.normal(kp, (B, N, M, 4), jnp.float32)
    params = make_params(kw, D, F)

    out = transformer2d_pallas(q, k, pos, params)
    out = jax.block_until_ready(out)

    ref = transformer2d_ref(q, k, pos, params)
    # bf16 MXU staging + weight-fusion reassociation -> loosened tolerance.
    np.testing.assert_allclose(np.asarray(out), np.asarray(ref), rtol=5e-2, atol=5e-2)

    print("KERNEL_OK")
</pallas_src>

<mosaic_0001>
module attributes {stable_mosaic.version = 11 : i64} {
  func.func @_transformer2d_kernel(%arg0: i32, %arg1: memref<8x32xf32, #tpu.memory_space<vmem>>, %arg2: memref<8x8x32xf32, #tpu.memory_space<vmem>>, %arg3: memref<8x8x4xf32, #tpu.memory_space<vmem>>, %arg4: memref<1x32xf32, #tpu.memory_space<vmem>>, %arg5: memref<1x32xf32, #tpu.memory_space<vmem>>, %arg6: memref<32x128xbf16, #tpu.memory_space<vmem>>, %arg7: memref<32x128xbf16, #tpu.memory_space<vmem>>, %arg8: memref<32x32xbf16, #tpu.memory_space<vmem>>, %arg9: memref<4x128xbf16, #tpu.memory_space<vmem>>, %arg10: memref<1x128xf32, #tpu.memory_space<vmem>>, %arg11: memref<128x128xbf16, #tpu.memory_space<vmem>>, %arg12: memref<1x128xf32, #tpu.memory_space<vmem>>, %arg13: memref<128x32xbf16, #tpu.memory_space<vmem>>, %arg14: memref<1x32xf32, #tpu.memory_space<vmem>>, %arg15: memref<128x32xbf16, #tpu.memory_space<vmem>>, %arg16: memref<1x32xf32, #tpu.memory_space<vmem>>, %arg17: memref<32x32xbf16, #tpu.memory_space<vmem>>, %arg18: memref<1x32xf32, #tpu.memory_space<vmem>>, %arg19: memref<1x32xf32, #tpu.memory_space<vmem>>, %arg20: memref<1x32xf32, #tpu.memory_space<vmem>>, %arg21: memref<32x64xbf16, #tpu.memory_space<vmem>>, %arg22: memref<1x64xf32, #tpu.memory_space<vmem>>, %arg23: memref<64x32xbf16, #tpu.memory_space<vmem>>, %arg24: memref<1x32xf32, #tpu.memory_space<vmem>>, %arg25: memref<8x32xf32, #tpu.memory_space<vmem>>) attributes {dimension_semantics = [#tpu.dimension_semantics<parallel>], iteration_bounds = array<i64: 2>, scalar_prefetch = 0 : i64, scratch_operands = 0 : i64, tpu.core_type = #tpu.core_type<tc>, window_params = [{transform_indices = @transform_0, window_bounds = array<i64: 8, 32>}, {transform_indices = @transform_1, window_bounds = array<i64: 8, 8, 32>}, {transform_indices = @transform_2, window_bounds = array<i64: 8, 8, 4>}, {pipeline_mode = #tpu.pipeline_mode<synchronous>, transform_indices = @transform_3, window_bounds = array<i64: 1, 32>}, {pipeline_mode = #tpu.pipeline_mode<synchronous>, transform_indices = @transform_4, window_bounds = array<i64: 1, 32>}, {pipeline_mode = #tpu.pipeline_mode<synchronous>, transform_indices = @transform_5, window_bounds = array<i64: 32, 128>}, {pipeline_mode = #tpu.pipeline_mode<synchronous>, transform_indices = @transform_6, window_bounds = array<i64: 32, 128>}, {pipeline_mode = #tpu.pipeline_mode<synchronous>, transform_indices = @transform_7, window_bounds = array<i64: 32, 32>}, {pipeline_mode = #tpu.pipeline_mode<synchronous>, transform_indices = @transform_8, window_bounds = array<i64: 4, 128>}, {pipeline_mode = #tpu.pipeline_mode<synchronous>, transform_indices = @transform_9, window_bounds = array<i64: 1, 128>}, {pipeline_mode = #tpu.pipeline_mode<synchronous>, transform_indices = @transform_10, window_bounds = array<i64: 128, 128>}, {pipeline_mode = #tpu.pipeline_mode<synchronous>, transform_indices = @transform_11, window_bounds = array<i64: 1, 128>}, {pipeline_mode = #tpu.pipeline_mode<synchronous>, transform_indices = @transform_12, window_bounds = array<i64: 128, 32>}, {pipeline_mode = #tpu.pipeline_mode<synchronous>, transform_indices = @transform_13, window_bounds = array<i64: 1, 32>}, {pipeline_mode = #tpu.pipeline_mode<synchronous>, transform_indices = @transform_14, window_bounds = array<i64: 128, 32>}, {pipeline_mode = #tpu.pipeline_mode<synchronous>, transform_indices = @transform_15, window_bounds = array<i64: 1, 32>}, {pipeline_mode = #tpu.pipeline_mode<synchronous>, transform_indices = @transform_16, window_bounds = array<i64: 32, 32>}, {pipeline_mode = #tpu.pipeline_mode<synchronous>, transform_indices = @transform_17, window_bounds = array<i64: 1, 32>}, {pipeline_mode = #tpu.pipeline_mode<synchronous>, transform_indices = @transform_18, window_bounds = array<i64: 1, 32>}, {pipeline_mode = #tpu.pipeline_mode<synchronous>, transform_indices = @transform_19, window_bounds = array<i64: 1, 32>}, {pipeline_mode = #tpu.pipeline_mode<synchronous>, transform_indices = @transform_20, window_bounds = array<i64: 32, 64>}, {pipeline_mode = #tpu.pipeline_mode<synchronous>, transform_indices = @transform_21, window_bounds = array<i64: 1, 64>}, {pipeline_mode = #tpu.pipeline_mode<synchronous>, transform_indices = @transform_22, window_bounds = array<i64: 64, 32>}, {pipeline_mode = #tpu.pipeline_mode<synchronous>, transform_indices = @transform_23, window_bounds = array<i64: 1, 32>}, {transform_indices = @transform_24, window_bounds = array<i64: 8, 32>}]} {
    %c0 = arith.constant 0 : index
    %c0_0 = arith.constant 0 : index
    %0 = vector.load %arg1[%c0, %c0_0] : memref<8x32xf32, #tpu.memory_space<vmem>>, vector<8x32xf32>
    %cst = arith.constant dense<0.000000e+00> : vector<8xf32>
    %1 = vector.multi_reduction <add>, %0, %cst [1] : vector<8x32xf32> to vector<8xf32>
    %2 = vector.shape_cast %1 : vector<8xf32> to vector<8x1xf32>
    %cst_1 = arith.constant 3.200000e+01 : f32
    %3 = vector.broadcast %cst_1 : f32 to vector<8x1xf32>
    %4 = arith.divf %2, %3 : vector<8x1xf32>
    %5 = vector.broadcast %4 : vector<8x1xf32> to vector<8x32xf32>
    %6 = arith.subf %0, %5 : vector<8x32xf32>
    %7 = arith.mulf %6, %6 : vector<8x32xf32>
    %cst_2 = arith.constant dense<0.000000e+00> : vector<8xf32>
    %8 = vector.multi_reduction <add>, %7, %cst_2 [1] : vector<8x32xf32> to vector<8xf32>
    %9 = vector.shape_cast %8 : vector<8xf32> to vector<8x1xf32>
    %cst_3 = arith.constant 3.200000e+01 : f32
    %10 = vector.broadcast %cst_3 : f32 to vector<8x1xf32>
    %11 = arith.divf %9, %10 : vector<8x1xf32>
    %cst_4 = arith.constant 9.99999997E-7 : f32
    %12 = vector.broadcast %cst_4 : f32 to vector<8x1xf32>
    %13 = arith.addf %11, %12 : vector<8x1xf32>
    %14 = math.rsqrt %13 : vector<8x1xf32>
    %15 = vector.broadcast %14 : vector<8x1xf32> to vector<8x32xf32>
    %16 = arith.mulf %6, %15 : vector<8x32xf32>
    %c0_5 = arith.constant 0 : index
    %c0_6 = arith.constant 0 : index
    %17 = vector.load %arg4[%c0_5, %c0_6] : memref<1x32xf32, #tpu.memory_space<vmem>>, vector<1x32xf32>
    %18 = vector.broadcast %17 : vector<1x32xf32> to vector<8x32xf32>
    %19 = arith.mulf %16, %18 : vector<8x32xf32>
    %c0_7 = arith.constant 0 : index
    %c0_8 = arith.constant 0 : index
    %20 = vector.load %arg5[%c0_7, %c0_8] : memref<1x32xf32, #tpu.memory_space<vmem>>, vector<1x32xf32>
    %21 = vector.broadcast %20 : vector<1x32xf32> to vector<8x32xf32>
    %22 = arith.addf %19, %21 : vector<8x32xf32>
    %23 = arith.truncf %22 : vector<8x32xf32> to vector<8x32xbf16>
    %c0_9 = arith.constant 0 : index
    %c0_10 = arith.constant 0 : index
    %24 = vector.load %arg6[%c0_9, %c0_10] : memref<32x128xbf16, #tpu.memory_space<vmem>>, vector<32x128xbf16>
    %cst_11 = arith.constant dense<0.000000e+00> : vector<8x128xf32>
    %25 = tpu.matmul %23, %24, %cst_11 {dimension_numbers = #tpu.dot_dimension_numbers<[1], [0], [0], [1], [0, 0, 1, 1], [], []>} : vector<8x32xbf16>, vector<32x128xbf16>, vector<8x128xf32> -> vector<8x128xf32>
    %c0_12 = arith.constant 0 : index
    %c0_13 = arith.constant 0 : index
    %c0_14 = arith.constant 0 : index
    %26 = vector.load %arg2[%c0_12, %c0_13, %c0_14] : memref<8x8x32xf32, #tpu.memory_space<vmem>>, vector<8x8x32xf32>
    %27 = vector.shape_cast %26 : vector<8x8x32xf32> to vector<64x32xf32>
    %28 = arith.truncf %27 : vector<64x32xf32> to vector<64x32xbf16>
    %c0_15 = arith.constant 0 : index
    %c0_16 = arith.constant 0 : index
    %c0_17 = arith.constant 0 : index
    %29 = vector.load %arg3[%c0_15, %c0_16, %c0_17] : memref<8x8x4xf32, #tpu.memory_space<vmem>>, vector<8x8x4xf32>
    %30 = vector.shape_cast %29 : vector<8x8x4xf32> to vector<64x4xf32>
    %31 = arith.truncf %30 : vector<64x4xf32> to vector<64x4xbf16>
    %c0_18 = arith.constant 0 : index
    %c0_19 = arith.constant 0 : index
    %32 = vector.load %arg9[%c0_18, %c0_19] : memref<4x128xbf16, #tpu.memory_space<vmem>>, vector<4x128xbf16>
    %cst_20 = arith.constant dense<0.000000e+00> : vector<64x128xf32>
    %33 = tpu.matmul %31, %32, %cst_20 {dimension_numbers = #tpu.dot_dimension_numbers<[1], [0], [0], [1], [0, 0, 1, 1], [], []>} : vector<64x4xbf16>, vector<4x128xbf16>, vector<64x128xf32> -> vector<64x128xf32>
    %c0_21 = arith.constant 0 : index
    %c0_22 = arith.constant 0 : index
    %34 = vector.load %arg10[%c0_21, %c0_22] : memref<1x128xf32, #tpu.memory_space<vmem>>, vector<1x128xf32>
    %35 = vector.broadcast %34 : vector<1x128xf32> to vector<64x128xf32>
    %36 = arith.addf %33, %35 : vector<64x128xf32>
    %cst_23 = arith.constant 0.000000e+00 : f32
    %37 = vector.broadcast %cst_23 : f32 to vector<64x128xf32>
    %38 = arith.maximumf %36, %37 : vector<64x128xf32>
    %39 = arith.truncf %38 : vector<64x128xf32> to vector<64x128xbf16>
    %c0_24 = arith.constant 0 : index
    %c0_25 = arith.constant 0 : index
    %40 = vector.load %arg7[%c0_24, %c0_25] : memref<32x128xbf16, #tpu.memory_space<vmem>>, vector<32x128xbf16>
    %cst_26 = arith.constant dense<0.000000e+00> : vector<64x128xf32>
    %41 = tpu.matmul %28, %40, %cst_26 {dimension_numbers = #tpu.dot_dimension_numbers<[1], [0], [0], [1], [0, 0, 1, 1], [], []>} : vector<64x32xbf16>, vector<32x128xbf16>, vector<64x128xf32> -> vector<64x128xf32>
    %c0_27 = arith.constant 0 : index
    %c0_28 = arith.constant 0 : index
    %42 = vector.load %arg11[%c0_27, %c0_28] : memref<128x128xbf16, #tpu.memory_space<vmem>>, vector<128x128xbf16>
    %cst_29 = arith.constant dense<0.000000e+00> : vector<64x128xf32>
    %43 = tpu.matmul %39, %42, %cst_29 {dimension_numbers = #tpu.dot_dimension_numbers<[1], [0], [0], [1], [0, 0, 1, 1], [], []>} : vector<64x128xbf16>, vector<128x128xbf16>, vector<64x128xf32> -> vector<64x128xf32>
    %c0_30 = arith.constant 0 : index
    %c0_31 = arith.constant 0 : index
    %44 = vector.load %arg12[%c0_30, %c0_31] : memref<1x128xf32, #tpu.memory_space<vmem>>, vector<1x128xf32>
    %45 = vector.broadcast %44 : vector<1x128xf32> to vector<64x128xf32>
    %46 = arith.addf %43, %45 : vector<64x128xf32>
    %47 = arith.addf %41, %46 : vector<64x128xf32>
    %48 = vector.shape_cast %47 : vector<64x128xf32> to vector<8x8x128xf32>
    %49 = vector.shape_cast %25 : vector<8x128xf32> to vector<8x1x128xf32>
    %50 = vector.broadcast %49 : vector<8x1x128xf32> to vector<8x8x128xf32>
    %51 = arith.subf %48, %50 : vector<8x8x128xf32>
    %cst_32 = arith.constant 0.000000e+00 : f32
    %52 = vector.broadcast %cst_32 : f32 to vector<8x8x128xf32>
    %53 = arith.maximumf %51, %52 : vector<8x8x128xf32>
    %54 = vector.shape_cast %53 : vector<8x8x128xf32> to vector<64x128xf32>
    %55 = arith.truncf %54 : vector<64x128xf32> to vector<64x128xbf16>
    %c0_33 = arith.constant 0 : index
    %c0_34 = arith.constant 0 : index
    %56 = vector.load %arg15[%c0_33, %c0_34] : memref<128x32xbf16, #tpu.memory_space<vmem>>, vector<128x32xbf16>
    %cst_35 = arith.constant dense<0.000000e+00> : vector<64x32xf32>
    %57 = tpu.matmul %55, %56, %cst_35 {dimension_numbers = #tpu.dot_dimension_numbers<[1], [0], [0], [1], [0, 0, 1, 1], [], []>} : vector<64x128xbf16>, vector<128x32xbf16>, vector<64x32xf32> -> vector<64x32xf32>
    %c0_36 = arith.constant 0 : index
    %c0_37 = arith.constant 0 : index
    %58 = vector.load %arg16[%c0_36, %c0_37] : memref<1x32xf32, #tpu.memory_space<vmem>>, vector<1x32xf32>
    %59 = vector.broadcast %58 : vector<1x32xf32> to vector<64x32xf32>
    %60 = arith.addf %57, %59 : vector<64x32xf32>
    %61 = vector.shape_cast %60 : vector<64x32xf32> to vector<8x8x32xf32>
    %cst_38 = arith.constant dense<0xFF800000> : vector<8x32xf32>
    %62 = vector.multi_reduction <maximumf>, %61, %cst_38 [1] : vector<8x8x32xf32> to vector<8x32xf32>
    %63 = vector.shape_cast %62 : vector<8x32xf32> to vector<8x1x32xf32>
    %64 = vector.broadcast %63 : vector<8x1x32xf32> to vector<8x8x32xf32>
    %65 = arith.subf %61, %64 : vector<8x8x32xf32>
    %66 = math.exp %65 : vector<8x8x32xf32>
    %cst_39 = arith.constant dense<0.000000e+00> : vector<8x32xf32>
    %67 = vector.multi_reduction <add>, %66, %cst_39 [1] : vector<8x8x32xf32> to vector<8x32xf32>
    %68 = vector.shape_cast %67 : vector<8x32xf32> to vector<8x1x32xf32>
    %69 = tpu.reciprocal %68 {approx = true} : vector<8x1x32xf32> -> vector<8x1x32xf32>
    %70 = vector.broadcast %69 : vector<8x1x32xf32> to vector<8x8x32xf32>
    %71 = arith.mulf %66, %70 : vector<8x8x32xf32>
    %c0_40 = arith.constant 0 : index
    %c0_41 = arith.constant 0 : index
    %72 = vector.load %arg8[%c0_40, %c0_41] : memref<32x32xbf16, #tpu.memory_space<vmem>>, vector<32x32xbf16>
    %cst_42 = arith.constant dense<0.000000e+00> : vector<64x32xf32>
    %73 = tpu.matmul %28, %72, %cst_42 {dimension_numbers = #tpu.dot_dimension_numbers<[1], [0], [0], [1], [0, 0, 1, 1], [], []>} : vector<64x32xbf16>, vector<32x32xbf16>, vector<64x32xf32> -> vector<64x32xf32>
    %c0_43 = arith.constant 0 : index
    %c0_44 = arith.constant 0 : index
    %74 = vector.load %arg13[%c0_43, %c0_44] : memref<128x32xbf16, #tpu.memory_space<vmem>>, vector<128x32xbf16>
    %cst_45 = arith.constant dense<0.000000e+00> : vector<64x32xf32>
    %75 = tpu.matmul %39, %74, %cst_45 {dimension_numbers = #tpu.dot_dimension_numbers<[1], [0], [0], [1], [0, 0, 1, 1], [], []>} : vector<64x128xbf16>, vector<128x32xbf16>, vector<64x32xf32> -> vector<64x32xf32>
    %c0_46 = arith.constant 0 : index
    %c0_47 = arith.constant 0 : index
    %76 = vector.load %arg14[%c0_46, %c0_47] : memref<1x32xf32, #tpu.memory_space<vmem>>, vector<1x32xf32>
    %77 = vector.broadcast %76 : vector<1x32xf32> to vector<64x32xf32>
    %78 = arith.addf %75, %77 : vector<64x32xf32>
    %79 = arith.addf %73, %78 : vector<64x32xf32>
    %80 = vector.shape_cast %79 : vector<64x32xf32> to vector<8x8x32xf32>
    %81 = arith.mulf %80, %71 : vector<8x8x32xf32>
    %cst_48 = arith.constant dense<0.000000e+00> : vector<8x32xf32>
    %82 = vector.multi_reduction <add>, %81, %cst_48 [1] : vector<8x8x32xf32> to vector<8x32xf32>
    %83 = arith.truncf %82 : vector<8x32xf32> to vector<8x32xbf16>
    %c0_49 = arith.constant 0 : index
    %c0_50 = arith.constant 0 : index
    %84 = vector.load %arg17[%c0_49, %c0_50] : memref<32x32xbf16, #tpu.memory_space<vmem>>, vector<32x32xbf16>
    %cst_51 = arith.constant dense<0.000000e+00> : vector<8x32xf32>
    %85 = tpu.matmul %83, %84, %cst_51 {dimension_numbers = #tpu.dot_dimension_numbers<[1], [0], [0], [1], [0, 0, 1, 1], [], []>} : vector<8x32xbf16>, vector<32x32xbf16>, vector<8x32xf32> -> vector<8x32xf32>
    %c0_52 = arith.constant 0 : index
    %c0_53 = arith.constant 0 : index
    %86 = vector.load %arg18[%c0_52, %c0_53] : memref<1x32xf32, #tpu.memory_space<vmem>>, vector<1x32xf32>
    %87 = vector.broadcast %86 : vector<1x32xf32> to vector<8x32xf32>
    %88 = arith.addf %85, %87 : vector<8x32xf32>
    %89 = arith.addf %88, %0 : vector<8x32xf32>
    %cst_54 = arith.constant dense<0.000000e+00> : vector<8xf32>
    %90 = vector.multi_reduction <add>, %89, %cst_54 [1] : vector<8x32xf32> to vector<8xf32>
    %91 = vector.shape_cast %90 : vector<8xf32> to vector<8x1xf32>
    %cst_55 = arith.constant 3.200000e+01 : f32
    %92 = vector.broadcast %cst_55 : f32 to vector<8x1xf32>
    %93 = arith.divf %91, %92 : vector<8x1xf32>
    %94 = vector.broadcast %93 : vector<8x1xf32> to vector<8x32xf32>
    %95 = arith.subf %89, %94 : vector<8x32xf32>
    %96 = arith.mulf %95, %95 : vector<8x32xf32>
    %cst_56 = arith.constant dense<0.000000e+00> : vector<8xf32>
    %97 = vector.multi_reduction <add>, %96, %cst_56 [1] : vector<8x32xf32> to vector<8xf32>
    %98 = vector.shape_cast %97 : vector<8xf32> to vector<8x1xf32>
    %cst_57 = arith.constant 3.200000e+01 : f32
    %99 = vector.broadcast %cst_57 : f32 to vector<8x1xf32>
    %100 = arith.divf %98, %99 : vector<8x1xf32>
    %cst_58 = arith.constant 9.99999997E-7 : f32
    %101 = vector.broadcast %cst_58 : f32 to vector<8x1xf32>
    %102 = arith.addf %100, %101 : vector<8x1xf32>
    %103 = math.rsqrt %102 : vector<8x1xf32>
    %104 = vector.broadcast %103 : vector<8x1xf32> to vector<8x32xf32>
    %105 = arith.mulf %95, %104 : vector<8x32xf32>
    %c0_59 = arith.constant 0 : index
    %c0_60 = arith.constant 0 : index
    %106 = vector.load %arg19[%c0_59, %c0_60] : memref<1x32xf32, #tpu.memory_space<vmem>>, vector<1x32xf32>
    %107 = vector.broadcast %106 : vector<1x32xf32> to vector<8x32xf32>
    %108 = arith.mulf %105, %107 : vector<8x32xf32>
    %c0_61 = arith.constant 0 : index
    %c0_62 = arith.constant 0 : index
    %109 = vector.load %arg20[%c0_61, %c0_62] : memref<1x32xf32, #tpu.memory_space<vmem>>, vector<1x32xf32>
    %110 = vector.broadcast %109 : vector<1x32xf32> to vector<8x32xf32>
    %111 = arith.addf %108, %110 : vector<8x32xf32>
    %112 = arith.truncf %111 : vector<8x32xf32> to vector<8x32xbf16>
    %c0_63 = arith.constant 0 : index
    %c0_64 = arith.constant 0 : index
    %113 = vector.load %arg21[%c0_63, %c0_64] : memref<32x64xbf16, #tpu.memory_space<vmem>>, vector<32x64xbf16>
    %cst_65 = arith.constant dense<0.000000e+00> : vector<8x64xf32>
    %114 = tpu.matmul %112, %113, %cst_65 {dimension_numbers = #tpu.dot_dimension_numbers<[1], [0], [0], [1], [0, 0, 1, 1], [], []>} : vector<8x32xbf16>, vector<32x64xbf16>, vector<8x64xf32> -> vector<8x64xf32>
    %c0_66 = arith.constant 0 : index
    %c0_67 = arith.constant 0 : index
    %115 = vector.load %arg22[%c0_66, %c0_67] : memref<1x64xf32, #tpu.memory_space<vmem>>, vector<1x64xf32>
    %116 = vector.broadcast %115 : vector<1x64xf32> to vector<8x64xf32>
    %117 = arith.addf %114, %116 : vector<8x64xf32>
    %cst_68 = arith.constant 0.000000e+00 : f32
    %118 = vector.broadcast %cst_68 : f32 to vector<8x64xf32>
    %119 = arith.maximumf %117, %118 : vector<8x64xf32>
    %120 = arith.truncf %119 : vector<8x64xf32> to vector<8x64xbf16>
    %c0_69 = arith.constant 0 : index
    %c0_70 = arith.constant 0 : index
    %121 = vector.load %arg23[%c0_69, %c0_70] : memref<64x32xbf16, #tpu.memory_space<vmem>>, vector<64x32xbf16>
    %cst_71 = arith.constant dense<0.000000e+00> : vector<8x32xf32>
    %122 = tpu.matmul %120, %121, %cst_71 {dimension_numbers = #tpu.dot_dimension_numbers<[1], [0], [0], [1], [0, 0, 1, 1], [], []>} : vector<8x64xbf16>, vector<64x32xbf16>, vector<8x32xf32> -> vector<8x32xf32>
    %c0_72 = arith.constant 0 : index
    %c0_73 = arith.constant 0 : index
    %123 = vector.load %arg24[%c0_72, %c0_73] : memref<1x32xf32, #tpu.memory_space<vmem>>, vector<1x32xf32>
    %124 = vector.broadcast %123 : vector<1x32xf32> to vector<8x32xf32>
    %125 = arith.addf %122, %124 : vector<8x32xf32>
    %126 = arith.addf %125, %89 : vector<8x32xf32>
    %c0_74 = arith.constant 0 : index
    %c0_75 = arith.constant 0 : index
    %127 = vector.load %arg25[%c0_74, %c0_75] : memref<8x32xf32, #tpu.memory_space<vmem>>, vector<8x32xf32>
    tpu.vector_store %arg25[%c0_74, %c0_75], %126 {strides = array<i32>} : memref<8x32xf32, #tpu.memory_space<vmem>>, vector<8x32xf32>,
    return
  }
  func.func @transform_0(%arg0: i32) -> (i32, i32) {
    %c0_i32 = arith.constant 0 : i32
    %c0_i32_0 = arith.constant 0 : i32
    return %arg0, %c0_i32 : i32, i32
  }
  func.func @transform_1(%arg0: i32) -> (i32, i32, i32) {
    %c0_i32 = arith.constant 0 : i32
    %c0_i32_0 = arith.constant 0 : i32
    %c0_i32_1 = arith.constant 0 : i32
    return %arg0, %c0_i32, %c0_i32_0 : i32, i32, i32
  }
  func.func @transform_2(%arg0: i32) -> (i32, i32, i32) {
    %c0_i32 = arith.constant 0 : i32
    %c0_i32_0 = arith.constant 0 : i32
    %c0_i32_1 = arith.constant 0 : i32
    return %arg0, %c0_i32, %c0_i32_0 : i32, i32, i32
  }
  func.func @transform_3(%arg0: i32) -> (i32, i32) {
    %c0_i32 = arith.constant 0 : i32
    %c0_i32_0 = arith.constant 0 : i32
    %c0_i32_1 = arith.constant 0 : i32
    return %c0_i32, %c0_i32_0 : i32, i32
  }
  func.func @transform_4(%arg0: i32) -> (i32, i32) {
    %c0_i32 = arith.constant 0 : i32
    %c0_i32_0 = arith.constant 0 : i32
    %c0_i32_1 = arith.constant 0 : i32
    return %c0_i32, %c0_i32_0 : i32, i32
  }
  func.func @transform_5(%arg0: i32) -> (i32, i32) {
    %c0_i32 = arith.constant 0 : i32
    %c0_i32_0 = arith.constant 0 : i32
    %c0_i32_1 = arith.constant 0 : i32
    return %c0_i32, %c0_i32_0 : i32, i32
  }
  func.func @transform_6(%arg0: i32) -> (i32, i32) {
    %c0_i32 = arith.constant 0 : i32
    %c0_i32_0 = arith.constant 0 : i32
    %c0_i32_1 = arith.constant 0 : i32
    return %c0_i32, %c0_i32_0 : i32, i32
  }
  func.func @transform_7(%arg0: i32) -> (i32, i32) {
    %c0_i32 = arith.constant 0 : i32
    %c0_i32_0 = arith.constant 0 : i32
    %c0_i32_1 = arith.constant 0 : i32
    return %c0_i32, %c0_i32_0 : i32, i32
  }
  func.func @transform_8(%arg0: i32) -> (i32, i32) {
    %c0_i32 = arith.constant 0 : i32
    %c0_i32_0 = arith.constant 0 : i32
    %c0_i32_1 = arith.constant 0 : i32
    return %c0_i32, %c0_i32_0 : i32, i32
  }
  func.func @transform_9(%arg0: i32) -> (i32, i32) {
    %c0_i32 = arith.constant 0 : i32
    %c0_i32_0 = arith.constant 0 : i32
    %c0_i32_1 = arith.constant 0 : i32
    return %c0_i32, %c0_i32_0 : i32, i32
  }
  func.func @transform_10(%arg0: i32) -> (i32, i32) {
    %c0_i32 = arith.constant 0 : i32
    %c0_i32_0 = arith.constant 0 : i32
    %c0_i32_1 = arith.constant 0 : i32
    return %c0_i32, %c0_i32_0 : i32, i32
  }
  func.func @transform_11(%arg0: i32) -> (i32, i32) {
    %c0_i32 = arith.constant 0 : i32
    %c0_i32_0 = arith.constant 0 : i32
    %c0_i32_1 = arith.constant 0 : i32
    return %c0_i32, %c0_i32_0 : i32, i32
  }
  func.func @transform_12(%arg0: i32) -> (i32, i32) {
    %c0_i32 = arith.constant 0 : i32
    %c0_i32_0 = arith.constant 0 : i32
    %c0_i32_1 = arith.constant 0 : i32
    return %c0_i32, %c0_i32_0 : i32, i32
  }
  func.func @transform_13(%arg0: i32) -> (i32, i32) {
    %c0_i32 = arith.constant 0 : i32
    %c0_i32_0 = arith.constant 0 : i32
    %c0_i32_1 = arith.constant 0 : i32
    return %c0_i32, %c0_i32_0 : i32, i32
  }
  func.func @transform_14(%arg0: i32) -> (i32, i32) {
    %c0_i32 = arith.constant 0 : i32
    %c0_i32_0 = arith.constant 0 : i32
    %c0_i32_1 = arith.constant 0 : i32
    return %c0_i32, %c0_i32_0 : i32, i32
  }
  func.func @transform_15(%arg0: i32) -> (i32, i32) {
    %c0_i32 = arith.constant 0 : i32
    %c0_i32_0 = arith.constant 0 : i32
    %c0_i32_1 = arith.constant 0 : i32
    return %c0_i32, %c0_i32_0 : i32, i32
  }
  func.func @transform_16(%arg0: i32) -> (i32, i32) {
    %c0_i32 = arith.constant 0 : i32
    %c0_i32_0 = arith.constant 0 : i32
    %c0_i32_1 = arith.constant 0 : i32
    return %c0_i32, %c0_i32_0 : i32, i32
  }
  func.func @transform_17(%arg0: i32) -> (i32, i32) {
    %c0_i32 = arith.constant 0 : i32
    %c0_i32_0 = arith.constant 0 : i32
    %c0_i32_1 = arith.constant 0 : i32
    return %c0_i32, %c0_i32_0 : i32, i32
  }
  func.func @transform_18(%arg0: i32) -> (i32, i32) {
    %c0_i32 = arith.constant 0 : i32
    %c0_i32_0 = arith.constant 0 : i32
    %c0_i32_1 = arith.constant 0 : i32
    return %c0_i32, %c0_i32_0 : i32, i32
  }
  func.func @transform_19(%arg0: i32) -> (i32, i32) {
    %c0_i32 = arith.constant 0 : i32
    %c0_i32_0 = arith.constant 0 : i32
    %c0_i32_1 = arith.constant 0 : i32
    return %c0_i32, %c0_i32_0 : i32, i32
  }
  func.func @transform_20(%arg0: i32) -> (i32, i32) {
    %c0_i32 = arith.constant 0 : i32
    %c0_i32_0 = arith.constant 0 : i32
    %c0_i32_1 = arith.constant 0 : i32
    return %c0_i32, %c0_i32_0 : i32, i32
  }
  func.func @transform_21(%arg0: i32) -> (i32, i32) {
    %c0_i32 = arith.constant 0 : i32
    %c0_i32_0 = arith.constant 0 : i32
    %c0_i32_1 = arith.constant 0 : i32
    return %c0_i32, %c0_i32_0 : i32, i32
  }
  func.func @transform_22(%arg0: i32) -> (i32, i32) {
    %c0_i32 = arith.constant 0 : i32
    %c0_i32_0 = arith.constant 0 : i32
    %c0_i32_1 = arith.constant 0 : i32
    return %c0_i32, %c0_i32_0 : i32, i32
  }
  func.func @transform_23(%arg0: i32) -> (i32, i32) {
    %c0_i32 = arith.constant 0 : i32
    %c0_i32_0 = arith.constant 0 : i32
    %c0_i32_1 = arith.constant 0 : i32
    return %c0_i32, %c0_i32_0 : i32, i32
  }
  func.func @transform_24(%arg0: i32) -> (i32, i32) {
    %c0_i32 = arith.constant 0 : i32
    %c0_i32_0 = arith.constant 0 : i32
    return %arg0, %c0_i32 : i32, i32
  }
}

</mosaic_0001>

<llo_original>
// kernel: tpu_custom_call.1
$region0: #{tpu_custom_call.1}
  #allocation0 [shape = 'u32[]', space=smem, size = 0x4, offset = 0x4, fixed_abs, tag = 'smem constant byte address 0x4 - core index']
  #allocation1 [shape = 'u32[144,128]{1,0:T(1,128)}', space=vmem, size = 0x12000, scoped, tag = 'internal scratch']
  %s0 = inlined_call_operand.vmem [shape: f32[16,32], index: 0, kind: input, shape index: {}]
  %s1 = inlined_call_operand.vmem [shape: f32[16,8,32], index: 1, kind: input, shape index: {}]
  %s2 = inlined_call_operand.vmem [shape: f32[16,8,4], index: 2, kind: input, shape index: {}]
  %s3 = inlined_call_operand.vmem [shape: f32[1,32], index: 3, kind: input, shape index: {}]
  %s4 = inlined_call_operand.vmem [shape: f32[1,32], index: 4, kind: input, shape index: {}]
  %s5 = inlined_call_operand.vmem [shape: bf16[32,128], index: 5, kind: input, shape index: {}]
  %s6 = inlined_call_operand.vmem [shape: bf16[32,128], index: 6, kind: input, shape index: {}]
  %s7 = inlined_call_operand.vmem [shape: bf16[32,32], index: 7, kind: input, shape index: {}]
  %s8 = inlined_call_operand.vmem [shape: bf16[4,128], index: 8, kind: input, shape index: {}]
  %s9 = inlined_call_operand.vmem [shape: f32[1,128], index: 9, kind: input, shape index: {}]
  %s10 = inlined_call_operand.vmem [shape: bf16[128,128], index: 10, kind: input, shape index: {}]
  %s11 = inlined_call_operand.vmem [shape: f32[1,128], index: 11, kind: input, shape index: {}]
  %s12 = inlined_call_operand.vmem [shape: bf16[128,32], index: 12, kind: input, shape index: {}]
  %s13 = inlined_call_operand.vmem [shape: f32[1,32], index: 13, kind: input, shape index: {}]
  %s14 = inlined_call_operand.vmem [shape: bf16[128,32], index: 14, kind: input, shape index: {}]
  %s15 = inlined_call_operand.vmem [shape: f32[1,32], index: 15, kind: input, shape index: {}]
  %s16 = inlined_call_operand.vmem [shape: bf16[32,32], index: 16, kind: input, shape index: {}]
  %s17 = inlined_call_operand.vmem [shape: f32[1,32], index: 17, kind: input, shape index: {}]
  %s18 = inlined_call_operand.vmem [shape: f32[1,32], index: 18, kind: input, shape index: {}]
  %s19 = inlined_call_operand.vmem [shape: f32[1,32], index: 19, kind: input, shape index: {}]
  %s20 = inlined_call_operand.vmem [shape: bf16[32,64], index: 20, kind: input, shape index: {}]
  %s21 = inlined_call_operand.vmem [shape: f32[1,64], index: 21, kind: input, shape index: {}]
  %s22 = inlined_call_operand.vmem [shape: bf16[64,32], index: 22, kind: input, shape index: {}]
  %s23 = inlined_call_operand.vmem [shape: f32[1,32], index: 23, kind: input, shape index: {}]
  %s24 = inlined_call_operand.hbm [shape: f32[16,32], index: 24, kind: output, shape index: {}]
  %s25 = sld [smem:[#allocation0]]
  $region129: #{tpu_custom_call.1} parent=0
    _
  %s27 = ssub.s32 1, %s25
  %s28 = scalar_select 0, %s27, %s25
  $region1: #{tpu_custom_call.1} parent=0
    #allocation2 [shape = 'u8[8192]{0}', space=vmem, size = 0x2000, scoped, tag = 'output window, operand 0']
    #allocation3 [shape = 's32[2]{0}', space=sflag, size = 0x8, scoped, tag = 'scoped memory for tpu_custom_call.1']
    %29 = vsyncpa [#allocation3], 0
    %s30 = scalar_lea.sflag [#allocation3], 1
    %31 = vsyncpa %s30, 0
    loop: start=0, step=1, limit=4
    $region2: #{tpu_custom_call.1} parent=1 // loop_pre_header
      _
    $region3: #{tpu_custom_call.1} parent=1 // loop_header
      %s33 = sphi 0, %s37
      %p34 = scmp.ge.s32.totalorder %s33, 4
      %s43 = sphi 0, %s45
      %s46 = sphi 0, %s43
      %s47 = sphi 0, %s46
      %s63 = sphi 0, %s47
      %s69 = sphi 0, %s71
      %s72 = sphi 0, %s69
      %s73 = sphi 0, %s72
      %s89 = sphi 0, %s73
      %s95 = sphi 0, %s97
      %s98 = sphi 0, %s95
      %s99 = sphi 0, %s98
      %s115 = sphi 0, %s99
      %s119 = sphi 0, %s119
      %s121 = sphi 0, %s119
      %s122 = sphi 0, %s121
      %s136 = sphi 0, %s122
      %s140 = sphi 0, %s140
      %s142 = sphi 0, %s140
      %s143 = sphi 0, %s142
      %s157 = sphi 0, %s143
      %s161 = sphi 0, %s161
      %s163 = sphi 0, %s161
      %s164 = sphi 0, %s163
      %s178 = sphi 0, %s164
      %s182 = sphi 0, %s182
      %s184 = sphi 0, %s182
      %s185 = sphi 0, %s184
      %s199 = sphi 0, %s185
      %s203 = sphi 0, %s203
      %s205 = sphi 0, %s203
      %s206 = sphi 0, %s205
      %s220 = sphi 0, %s206
      %s224 = sphi 0, %s224
      %s226 = sphi 0, %s224
      %s227 = sphi 0, %s226
      %s241 = sphi 0, %s227
      %s245 = sphi 0, %s245
      %s247 = sphi 0, %s245
      %s248 = sphi 0, %s247
      %s262 = sphi 0, %s248
      %s266 = sphi 0, %s266
      %s268 = sphi 0, %s266
      %s269 = sphi 0, %s268
      %s283 = sphi 0, %s269
      %s287 = sphi 0, %s287
      %s289 = sphi 0, %s287
      %s290 = sphi 0, %s289
      %s304 = sphi 0, %s290
      %s308 = sphi 0, %s308
      %s310 = sphi 0, %s308
      %s311 = sphi 0, %s310
      %s325 = sphi 0, %s311
      %s329 = sphi 0, %s329
      %s331 = sphi 0, %s329
      %s332 = sphi 0, %s331
      %s346 = sphi 0, %s332
      %s350 = sphi 0, %s350
      %s352 = sphi 0, %s350
      %s353 = sphi 0, %s352
      %s367 = sphi 0, %s353
      %s371 = sphi 0, %s371
      %s373 = sphi 0, %s371
      %s374 = sphi 0, %s373
      %s388 = sphi 0, %s374
      %s392 = sphi 0, %s392
      %s394 = sphi 0, %s392
      %s395 = sphi 0, %s394
      %s409 = sphi 0, %s395
      %s413 = sphi 0, %s413
      %s415 = sphi 0, %s413
      %s416 = sphi 0, %s415
      %s430 = sphi 0, %s416
      %s434 = sphi 0, %s434
      %s436 = sphi 0, %s434
      %s437 = sphi 0, %s436
      %s451 = sphi 0, %s437
      %s455 = sphi 0, %s455
      %s457 = sphi 0, %s455
      %s458 = sphi 0, %s457
      %s472 = sphi 0, %s458
      %s476 = sphi 0, %s476
      %s478 = sphi 0, %s476
      %s479 = sphi 0, %s478
      %s493 = sphi 0, %s479
      %s497 = sphi 0, %s497
      %s499 = sphi 0, %s497
      %s500 = sphi 0, %s499
      %s514 = sphi 0, %s500
      %s518 = sphi 0, %s518
      %s520 = sphi 0, %s518
      %s521 = sphi 0, %s520
      %s535 = sphi 0, %s521
      %s539 = sphi 0, %s539
      %s541 = sphi 0, %s539
      %s542 = sphi 0, %s541
      %s556 = sphi 0, %s542
      %s562 = sphi 0, %s564
      %s565 = sphi 0, %s562
      %s566 = sphi 0, %s565
      %s582 = sphi 0, %s566
    $region4: #{tpu_custom_call.1} parent=1 // loop_header_branch
      %36 = sbr.rel (%p34) target = $region8
    $region5: #{tpu_custom_call.1} parent=1 // loop_body
      %s38 = ssub.s32 %s33, 1
      %s39 = ssub.s32 %s33, 2
      %s40 = sadd.s32 %s33, 1
      %s41 = ssub.s32 %s33, %s40
      %p42 = scmp.eq.s32.totalorder %s41, 0
      %s44 = sadd.s32 %s43, 1
      %s45 = scalar_select %p42, %s43, %s44
      %p48 = pneg %p42
      %p49 = scmp.eq.s32.totalorder %s33, 1
      %p50 = por %p48, %p49
      %p51 = scmp.ne.s32.totalorder %s43, %s46
      %p52 = scmp.eq.s32.totalorder %s33, 0
      %p53 = por %p51, %p52
      %p54 = scmp.ne.s32.totalorder %s43, %s46
      %p55 = scmp.eq.s32.totalorder %s38, 1
      %p56 = por %p54, %p55
      %p57 = scmp.ne.s32.totalorder %s46, %s47
      %p58 = scmp.eq.s32.totalorder %s38, 0
      %p59 = por %p57, %p58
      %p60 = scmp.ne.s32.totalorder %s46, %s47
      %p61 = scmp.eq.s32.totalorder %s39, 1
      %p62 = por %p60, %p61
      %p64 = scmp.ne.s32.totalorder %s47, %s63
      %p65 = scmp.eq.s32.totalorder %s39, 0
      %p66 = por %p64, %p65
      %s67 = ssub.s32 %s33, %s40
      %p68 = scmp.eq.s32.totalorder %s67, 0
      %s70 = sadd.s32 %s69, 1
      %s71 = scalar_select %p68, %s69, %s70
      %p74 = pneg %p68
      %p75 = scmp.eq.s32.totalorder %s33, 1
      %p76 = por %p74, %p75
      %p77 = scmp.ne.s32.totalorder %s69, %s72
      %p78 = scmp.eq.s32.totalorder %s33, 0
      %p79 = por %p77, %p78
      %p80 = scmp.ne.s32.totalorder %s69, %s72
      %p81 = scmp.eq.s32.totalorder %s38, 1
      %p82 = por %p80, %p81
      %p83 = scmp.ne.s32.totalorder %s72, %s73
      %p84 = scmp.eq.s32.totalorder %s38, 0
      %p85 = por %p83, %p84
      %p86 = scmp.ne.s32.totalorder %s72, %s73
      %p87 = scmp.eq.s32.totalorder %s39, 1
      %p88 = por %p86, %p87
      %p90 = scmp.ne.s32.totalorder %s73, %s89
      %p91 = scmp.eq.s32.totalorder %s39, 0
      %p92 = por %p90, %p91
      %s93 = ssub.s32 %s33, %s40
      %p94 = scmp.eq.s32.totalorder %s93, 0
      %s96 = sadd.s32 %s95, 1
      %s97 = scalar_select %p94, %s95, %s96
      %p100 = pneg %p94
      %p101 = scmp.eq.s32.totalorder %s33, 1
      %p102 = por %p100, %p101
      %p103 = scmp.ne.s32.totalorder %s95, %s98
      %p104 = scmp.eq.s32.totalorder %s33, 0
      %p105 = por %p103, %p104
      %p106 = scmp.ne.s32.totalorder %s95, %s98
      %p107 = scmp.eq.s32.totalorder %s38, 1
      %p108 = por %p106, %p107
      %p109 = scmp.ne.s32.totalorder %s98, %s99
      %p110 = scmp.eq.s32.totalorder %s38, 0
      %p111 = por %p109, %p110
      %p112 = scmp.ne.s32.totalorder %s98, %s99
      %p113 = scmp.eq.s32.totalorder %s39, 1
      %p114 = por %p112, %p113
      %p116 = scmp.ne.s32.totalorder %s99, %s115
      %p117 = scmp.eq.s32.totalorder %s39, 0
      %p118 = por %p116, %p117
      %s120 = sadd.s32 %s119, 1
      %p123 = scmp.eq.s32.totalorder %s33, 1
      %p124 = scmp.ne.s32.totalorder %s119, %s121
      %p125 = scmp.eq.s32.totalorder %s33, 0
      %p126 = por %p124, %p125
      %p127 = scmp.ne.s32.totalorder %s119, %s121
      %p128 = scmp.eq.s32.totalorder %s38, 1
      %p129 = por %p127, %p128
      %p130 = scmp.ne.s32.totalorder %s121, %s122
      %p131 = scmp.eq.s32.totalorder %s38, 0
      %p132 = por %p130, %p131
      %p133 = scmp.ne.s32.totalorder %s121, %s122
      %p134 = scmp.eq.s32.totalorder %s39, 1
      %p135 = por %p133, %p134
      %p137 = scmp.ne.s32.totalorder %s122, %s136
      %p138 = scmp.eq.s32.totalorder %s39, 0
      %p139 = por %p137, %p138
      %s141 = sadd.s32 %s140, 1
      %p144 = scmp.eq.s32.totalorder %s33, 1
      %p145 = scmp.ne.s32.totalorder %s140, %s142
      %p146 = scmp.eq.s32.totalorder %s33, 0
      %p147 = por %p145, %p146
      %p148 = scmp.ne.s32.totalorder %s140, %s142
      %p149 = scmp.eq.s32.totalorder %s38, 1
      %p150 = por %p148, %p149
      %p151 = scmp.ne.s32.totalorder %s142, %s143
      %p152 = scmp.eq.s32.totalorder %s38, 0
      %p153 = por %p151, %p152
      %p154 = scmp.ne.s32.totalorder %s142, %s143
      %p155 = scmp.eq.s32.totalorder %s39, 1
      %p156 = por %p154, %p155
      %p158 = scmp.ne.s32.totalorder %s143, %s157
      %p159 = scmp.eq.s32.totalorder %s39, 0
      %p160 = por %p158, %p159
      %s162 = sadd.s32 %s161, 1
      %p165 = scmp.eq.s32.totalorder %s33, 1
      %p166 = scmp.ne.s32.totalorder %s161, %s163
      %p167 = scmp.eq.s32.totalorder %s33, 0
      %p168 = por %p166, %p167
      %p169 = scmp.ne.s32.totalorder %s161, %s163
      %p170 = scmp.eq.s32.totalorder %s38, 1
      %p171 = por %p169, %p170
      %p172 = scmp.ne.s32.totalorder %s163, %s164
      %p173 = scmp.eq.s32.totalorder %s38, 0
      %p174 = por %p172, %p173
      %p175 = scmp.ne.s32.totalorder %s163, %s164
      %p176 = scmp.eq.s32.totalorder %s39, 1
      %p177 = por %p175, %p176
      %p179 = scmp.ne.s32.totalorder %s164, %s178
      %p180 = scmp.eq.s32.totalorder %s39, 0
      %p181 = por %p179, %p180
      %s183 = sadd.s32 %s182, 1
      %p186 = scmp.eq.s32.totalorder %s33, 1
      %p187 = scmp.ne.s32.totalorder %s182, %s184
      %p188 = scmp.eq.s32.totalorder %s33, 0
      %p189 = por %p187, %p188
      %p190 = scmp.ne.s32.totalorder %s182, %s184
      %p191 = scmp.eq.s32.totalorder %s38, 1
      %p192 = por %p190, %p191
      %p193 = scmp.ne.s32.totalorder %s184, %s185
      %p194 = scmp.eq.s32.totalorder %s38, 0
      %p195 = por %p193, %p194
      %p196 = scmp.ne.s32.totalorder %s184, %s185
      %p197 = scmp.eq.s32.totalorder %s39, 1
      %p198 = por %p196, %p197
      %p200 = scmp.ne.s32.totalorder %s185, %s199
      %p201 = scmp.eq.s32.totalorder %s39, 0
      %p202 = por %p200, %p201
      %s204 = sadd.s32 %s203, 1
      %p207 = scmp.eq.s32.totalorder %s33, 1
      %p208 = scmp.ne.s32.totalorder %s203, %s205
      %p209 = scmp.eq.s32.totalorder %s33, 0
      %p210 = por %p208, %p209
      %p211 = scmp.ne.s32.totalorder %s203, %s205
      %p212 = scmp.eq.s32.totalorder %s38, 1
      %p213 = por %p211, %p212
      %p214 = scmp.ne.s32.totalorder %s205, %s206
      %p215 = scmp.eq.s32.totalorder %s38, 0
      %p216 = por %p214, %p215
      %p217 = scmp.ne.s32.totalorder %s205, %s206
      %p218 = scmp.eq.s32.totalorder %s39, 1
      %p219 = por %p217, %p218
      %p221 = scmp.ne.s32.totalorder %s206, %s220
      %p222 = scmp.eq.s32.totalorder %s39, 0
      %p223 = por %p221, %p222
      %s225 = sadd.s32 %s224, 1
      %p228 = scmp.eq.s32.totalorder %s33, 1
      %p229 = scmp.ne.s32.totalorder %s224, %s226
      %p230 = scmp.eq.s32.totalorder %s33, 0
      %p231 = por %p229, %p230
      %p232 = scmp.ne.s32.totalorder %s224, %s226
      %p233 = scmp.eq.s32.totalorder %s38, 1
      %p234 = por %p232, %p233
      %p235 = scmp.ne.s32.totalorder %s226, %s227
      %p236 = scmp.eq.s32.totalorder %s38, 0
      %p237 = por %p235, %p236
      %p238 = scmp.ne.s32.totalorder %s226, %s227
      %p239 = scmp.eq.s32.totalorder %s39, 1
      %p240 = por %p238, %p239
      %p242 = scmp.ne.s32.totalorder %s227, %s241
      %p243 = scmp.eq.s32.totalorder %s39, 0
      %p244 = por %p242, %p243
      %s246 = sadd.s32 %s245, 1
      %p249 = scmp.eq.s32.totalorder %s33, 1
      %p250 = scmp.ne.s32.totalorder %s245, %s247
      %p251 = scmp.eq.s32.totalorder %s33, 0
      %p252 = por %p250, %p251
      %p253 = scmp.ne.s32.totalorder %s245, %s247
      %p254 = scmp.eq.s32.totalorder %s38, 1
      %p255 = por %p253, %p254
      %p256 = scmp.ne.s32.totalorder %s247, %s248
      %p257 = scmp.eq.s32.totalorder %s38, 0
      %p258 = por %p256, %p257
      %p259 = scmp.ne.s32.totalorder %s247, %s248
      %p260 = scmp.eq.s32.totalorder %s39, 1
      %p261 = por %p259, %p260
      %p263 = scmp.ne.s32.totalorder %s248, %s262
      %p264 = scmp.eq.s32.totalorder %s39, 0
      %p265 = por %p263, %p264
      %s267 = sadd.s32 %s266, 1
      %p270 = scmp.eq.s32.totalorder %s33, 1
      %p271 = scmp.ne.s32.totalorder %s266, %s268
      %p272 = scmp.eq.s32.totalorder %s33, 0
      %p273 = por %p271, %p272
      %p274 = scmp.ne.s32.totalorder %s266, %s268
      %p275 = scmp.eq.s32.totalorder %s38, 1
      %p276 = por %p274, %p275
      %p277 = scmp.ne.s32.totalorder %s268, %s269
      %p278 = scmp.eq.s32.totalorder %s38, 0
      %p279 = por %p277, %p278
      %p280 = scmp.ne.s32.totalorder %s268, %s269
      %p281 = scmp.eq.s32.totalorder %s39, 1
      %p282 = por %p280, %p281
      %p284 = scmp.ne.s32.totalorder %s269, %s283
      %p285 = scmp.eq.s32.totalorder %s39, 0
      %p286 = por %p284, %p285
      %s288 = sadd.s32 %s287, 1
      %p291 = scmp.eq.s32.totalorder %s33, 1
      %p292 = scmp.ne.s32.totalorder %s287, %s289
      %p293 = scmp.eq.s32.totalorder %s33, 0
      %p294 = por %p292, %p293
      %p295 = scmp.ne.s32.totalorder %s287, %s289
      %p296 = scmp.eq.s32.totalorder %s38, 1
      %p297 = por %p295, %p296
      %p298 = scmp.ne.s32.totalorder %s289, %s290
      %p299 = scmp.eq.s32.totalorder %s38, 0
      %p300 = por %p298, %p299
      %p301 = scmp.ne.s32.totalorder %s289, %s290
      %p302 = scmp.eq.s32.totalorder %s39, 1
      %p303 = por %p301, %p302
      %p305 = scmp.ne.s32.totalorder %s290, %s304
      %p306 = scmp.eq.s32.totalorder %s39, 0
      %p307 = por %p305, %p306
      %s309 = sadd.s32 %s308, 1
      %p312 = scmp.eq.s32.totalorder %s33, 1
      %p313 = scmp.ne.s32.totalorder %s308, %s310
      %p314 = scmp.eq.s32.totalorder %s33, 0
      %p315 = por %p313, %p314
      %p316 = scmp.ne.s32.totalorder %s308, %s310
      %p317 = scmp.eq.s32.totalorder %s38, 1
      %p318 = por %p316, %p317
      %p319 = scmp.ne.s32.totalorder %s310, %s311
      %p320 = scmp.eq.s32.totalorder %s38, 0
      %p321 = por %p319, %p320
      %p322 = scmp.ne.s32.totalorder %s310, %s311
      %p323 = scmp.eq.s32.totalorder %s39, 1
      %p324 = por %p322, %p323
      %p326 = scmp.ne.s32.totalorder %s311, %s325
      %p327 = scmp.eq.s32.totalorder %s39, 0
      %p328 = por %p326, %p327
      %s330 = sadd.s32 %s329, 1
      %p333 = scmp.eq.s32.totalorder %s33, 1
      %p334 = scmp.ne.s32.totalorder %s329, %s331
      %p335 = scmp.eq.s32.totalorder %s33, 0
      %p336 = por %p334, %p335
      %p337 = scmp.ne.s32.totalorder %s329, %s331
      %p338 = scmp.eq.s32.totalorder %s38, 1
      %p339 = por %p337, %p338
      %p340 = scmp.ne.s32.totalorder %s331, %s332
      %p341 = scmp.eq.s32.totalorder %s38, 0
      %p342 = por %p340, %p341
      %p343 = scmp.ne.s32.totalorder %s331, %s332
      %p344 = scmp.eq.s32.totalorder %s39, 1
      %p345 = por %p343, %p344
      %p347 = scmp.ne.s32.totalorder %s332, %s346
      %p348 = scmp.eq.s32.totalorder %s39, 0
      %p349 = por %p347, %p348
      %s351 = sadd.s32 %s350, 1
      %p354 = scmp.eq.s32.totalorder %s33, 1
      %p355 = scmp.ne.s32.totalorder %s350, %s352
      %p356 = scmp.eq.s32.totalorder %s33, 0
      %p357 = por %p355, %p356
      %p358 = scmp.ne.s32.totalorder %s350, %s352
      %p359 = scmp.eq.s32.totalorder %s38, 1
      %p360 = por %p358, %p359
      %p361 = scmp.ne.s32.totalorder %s352, %s353
      %p362 = scmp.eq.s32.totalorder %s38, 0
      %p363 = por %p361, %p362
      %p364 = scmp.ne.s32.totalorder %s352, %s353
      %p365 = scmp.eq.s32.totalorder %s39, 1
      %p366 = por %p364, %p365
      %p368 = scmp.ne.s32.totalorder %s353, %s367
      %p369 = scmp.eq.s32.totalorder %s39, 0
      %p370 = por %p368, %p369
      %s372 = sadd.s32 %s371, 1
      %p375 = scmp.eq.s32.totalorder %s33, 1
      %p376 = scmp.ne.s32.totalorder %s371, %s373
      %p377 = scmp.eq.s32.totalorder %s33, 0
      %p378 = por %p376, %p377
      %p379 = scmp.ne.s32.totalorder %s371, %s373
      %p380 = scmp.eq.s32.totalorder %s38, 1
      %p381 = por %p379, %p380
      %p382 = scmp.ne.s32.totalorder %s373, %s374
      %p383 = scmp.eq.s32.totalorder %s38, 0
      %p384 = por %p382, %p383
      %p385 = scmp.ne.s32.totalorder %s373, %s374
      %p386 = scmp.eq.s32.totalorder %s39, 1
      %p387 = por %p385, %p386
      %p389 = scmp.ne.s32.totalorder %s374, %s388
      %p390 = scmp.eq.s32.totalorder %s39, 0
      %p391 = por %p389, %p390
      %s393 = sadd.s32 %s392, 1
      %p396 = scmp.eq.s32.totalorder %s33, 1
      %p397 = scmp.ne.s32.totalorder %s392, %s394
      %p398 = scmp.eq.s32.totalorder %s33, 0
      %p399 = por %p397, %p398
      %p400 = scmp.ne.s32.totalorder %s392, %s394
      %p401 = scmp.eq.s32.totalorder %s38, 1
      %p402 = por %p400, %p401
      %p403 = scmp.ne.s32.totalorder %s394, %s395
      %p404 = scmp.eq.s32.totalorder %s38, 0
      %p405 = por %p403, %p404
      %p406 = scmp.ne.s32.totalorder %s394, %s395
      %p407 = scmp.eq.s32.totalorder %s39, 1
      %p408 = por %p406, %p407
      %p410 = scmp.ne.s32.totalorder %s395, %s409
      %p411 = scmp.eq.s32.totalorder %s39, 0
      %p412 = por %p410, %p411
      %s414 = sadd.s32 %s413, 1
      %p417 = scmp.eq.s32.totalorder %s33, 1
      %p418 = scmp.ne.s32.totalorder %s413, %s415
      %p419 = scmp.eq.s32.totalorder %s33, 0
      %p420 = por %p418, %p419
      %p421 = scmp.ne.s32.totalorder %s413, %s415
      %p422 = scmp.eq.s32.totalorder %s38, 1
      %p423 = por %p421, %p422
      %p424 = scmp.ne.s32.totalorder %s415, %s416
      %p425 = scmp.eq.s32.totalorder %s38, 0
      %p426 = por %p424, %p425
      %p427 = scmp.ne.s32.totalorder %s415, %s416
      %p428 = scmp.eq.s32.totalorder %s39, 1
      %p429 = por %p427, %p428
      %p431 = scmp.ne.s32.totalorder %s416, %s430
      %p432 = scmp.eq.s32.totalorder %s39, 0
      %p433 = por %p431, %p432
      %s435 = sadd.s32 %s434, 1
      %p438 = scmp.eq.s32.totalorder %s33, 1
      %p439 = scmp.ne.s32.totalorder %s434, %s436
      %p440 = scmp.eq.s32.totalorder %s33, 0
      %p441 = por %p439, %p440
      %p442 = scmp.ne.s32.totalorder %s434, %s436
      %p443 = scmp.eq.s32.totalorder %s38, 1
      %p444 = por %p442, %p443
      %p445 = scmp.ne.s32.totalorder %s436, %s437
      %p446 = scmp.eq.s32.totalorder %s38, 0
      %p447 = por %p445, %p446
      %p448 = scmp.ne.s32.totalorder %s436, %s437
      %p449 = scmp.eq.s32.totalorder %s39, 1
      %p450 = por %p448, %p449
      %p452 = scmp.ne.s32.totalorder %s437, %s451
      %p453 = scmp.eq.s32.totalorder %s39, 0
      %p454 = por %p452, %p453
      %s456 = sadd.s32 %s455, 1
      %p459 = scmp.eq.s32.totalorder %s33, 1
      %p460 = scmp.ne.s32.totalorder %s455, %s457
      %p461 = scmp.eq.s32.totalorder %s33, 0
      %p462 = por %p460, %p461
      %p463 = scmp.ne.s32.totalorder %s455, %s457
      %p464 = scmp.eq.s32.totalorder %s38, 1
      %p465 = por %p463, %p464
      %p466 = scmp.ne.s32.totalorder %s457, %s458
      %p467 = scmp.eq.s32.totalorder %s38, 0
      %p468 = por %p466, %p467
      %p469 = scmp.ne.s32.totalorder %s457, %s458
      %p470 = scmp.eq.s32.totalorder %s39, 1
      %p471 = por %p469, %p470
      %p473 = scmp.ne.s32.totalorder %s458, %s472
      %p474 = scmp.eq.s32.totalorder %s39, 0
      %p475 = por %p473, %p474
      %s477 = sadd.s32 %s476, 1
      %p480 = scmp.eq.s32.totalorder %s33, 1
      %p481 = scmp.ne.s32.totalorder %s476, %s478
      %p482 = scmp.eq.s32.totalorder %s33, 0
      %p483 = por %p481, %p482
      %p484 = scmp.ne.s32.totalorder %s476, %s478
      %p485 = scmp.eq.s32.totalorder %s38, 1
      %p486 = por %p484, %p485
      %p487 = scmp.ne.s32.totalorder %s478, %s479
      %p488 = scmp.eq.s32.totalorder %s38, 0
      %p489 = por %p487, %p488
      %p490 = scmp.ne.s32.totalorder %s478, %s479
      %p491 = scmp.eq.s32.totalorder %s39, 1
      %p492 = por %p490, %p491
      %p494 = scmp.ne.s32.totalorder %s479, %s493
      %p495 = scmp.eq.s32.totalorder %s39, 0
      %p496 = por %p494, %p495
      %s498 = sadd.s32 %s497, 1
      %p501 = scmp.eq.s32.totalorder %s33, 1
      %p502 = scmp.ne.s32.totalorder %s497, %s499
      %p503 = scmp.eq.s32.totalorder %s33, 0
      %p504 = por %p502, %p503
      %p505 = scmp.ne.s32.totalorder %s497, %s499
      %p506 = scmp.eq.s32.totalorder %s38, 1
      %p507 = por %p505, %p506
      %p508 = scmp.ne.s32.totalorder %s499, %s500
      %p509 = scmp.eq.s32.totalorder %s38, 0
      %p510 = por %p508, %p509
      %p511 = scmp.ne.s32.totalorder %s499, %s500
      %p512 = scmp.eq.s32.totalorder %s39, 1
      %p513 = por %p511, %p512
      %p515 = scmp.ne.s32.totalorder %s500, %s514
      %p516 = scmp.eq.s32.totalorder %s39, 0
      %p517 = por %p515, %p516
      %s519 = sadd.s32 %s518, 1
      %p522 = scmp.eq.s32.totalorder %s33, 1
      %p523 = scmp.ne.s32.totalorder %s518, %s520
      %p524 = scmp.eq.s32.totalorder %s33, 0
      %p525 = por %p523, %p524
      %p526 = scmp.ne.s32.totalorder %s518, %s520
      %p527 = scmp.eq.s32.totalorder %s38, 1
      %p528 = por %p526, %p527
      %p529 = scmp.ne.s32.totalorder %s520, %s521
      %p530 = scmp.eq.s32.totalorder %s38, 0
      %p531 = por %p529, %p530
      %p532 = scmp.ne.s32.totalorder %s520, %s521
      %p533 = scmp.eq.s32.totalorder %s39, 1
      %p534 = por %p532, %p533
      %p536 = scmp.ne.s32.totalorder %s521, %s535
      %p537 = scmp.eq.s32.totalorder %s39, 0
      %p538 = por %p536, %p537
      %s540 = sadd.s32 %s539, 1
      %p543 = scmp.eq.s32.totalorder %s33, 1
      %p544 = scmp.ne.s32.totalorder %s539, %s541
      %p545 = scmp.eq.s32.totalorder %s33, 0
      %p546 = por %p544, %p545
      %p547 = scmp.ne.s32.totalorder %s539, %s541
      %p548 = scmp.eq.s32.totalorder %s38, 1
      %p549 = por %p547, %p548
      %p550 = scmp.ne.s32.totalorder %s541, %s542
      %p551 = scmp.eq.s32.totalorder %s38, 0
      %p552 = por %p550, %p551
      %p553 = scmp.ne.s32.totalorder %s541, %s542
      %p554 = scmp.eq.s32.totalorder %s39, 1
      %p555 = por %p553, %p554
      %p557 = scmp.ne.s32.totalorder %s542, %s556
      %p558 = scmp.eq.s32.totalorder %s39, 0
      %p559 = por %p557, %p558
      %s560 = ssub.s32 %s33, %s40
      %p561 = scmp.eq.s32.totalorder %s560, 0
      %s563 = sadd.s32 %s562, 1
      %s564 = scalar_select %p561, %s562, %s563
      %p567 = pneg %p561
      %p568 = scmp.eq.s32.totalorder %s33, 1
      %p569 = por %p567, %p568
      %p570 = scmp.ne.s32.totalorder %s562, %s565
      %p571 = scmp.eq.s32.totalorder %s33, 0
      %p572 = por %p570, %p571
      %p573 = scmp.ne.s32.totalorder %s562, %s565
      %p574 = scmp.eq.s32.totalorder %s38, 1
      %p575 = por %p573, %p574
      %p576 = scmp.ne.s32.totalorder %s565, %s566
      %p577 = scmp.eq.s32.totalorder %s38, 0
      %p578 = por %p576, %p577
      %p579 = scmp.ne.s32.totalorder %s565, %s566
      %p580 = scmp.eq.s32.totalorder %s39, 1
      %p581 = por %p579, %p580
      %p583 = scmp.ne.s32.totalorder %s566, %s582
      %p584 = scmp.eq.s32.totalorder %s39, 0
      %p585 = por %p583, %p584
      %p586 = scmp.le.s32.totalorder 1, %s33
      %p587 = scmp.lt.s32.totalorder %s33, 3
      %p588 = pnand %p586, %p587
      %p589 = pneg %p588
      // Predicated region
      $region9: #{tpu_custom_call.1} parent=5 // pred_check
        _
      $region10: #{tpu_custom_call.1} parent=5 // pred_check_branch
        %591 = sbr.rel (%p588) target = $region12
      $region11: #{tpu_custom_call.1} parent=5 // pred_region
        %s592 = ssub.s32 %s33, 1
        // Predicated region
        $region13: #{tpu_custom_call.1} parent=11 // pred_check
          %p593 = pneg %p132
        $region14: #{tpu_custom_call.1} parent=11 // pred_check_branch
          %595 = sbr.rel (%p593) target = $region16
        $region15: #{tpu_custom_call.1} parent=11 // pred_region
          _
        $region16: #{tpu_custom_call.1} parent=11 // pred_fallthru
          _
        // Predicated region
        $region17: #{tpu_custom_call.1} parent=11 // pred_check
          %p596 = pneg %p153
        $region18: #{tpu_custom_call.1} parent=11 // pred_check_branch
          %598 = sbr.rel (%p596) target = $region20
        $region19: #{tpu_custom_call.1} parent=11 // pred_region
          _
        $region20: #{tpu_custom_call.1} parent=11 // pred_fallthru
          _
        // Predicated region
        $region21: #{tpu_custom_call.1} parent=11 // pred_check
          %p599 = pneg %p174
        $region22: #{tpu_custom_call.1} parent=11 // pred_check_branch
          %601 = sbr.rel (%p599) target = $region24
        $region23: #{tpu_custom_call.1} parent=11 // pred_region
          _
        $region24: #{tpu_custom_call.1} parent=11 // pred_fallthru
          _
        // Predicated region
        $region25: #{tpu_custom_call.1} parent=11 // pred_check
          %p602 = pneg %p195
        $region26: #{tpu_custom_call.1} parent=11 // pred_check_branch
          %604 = sbr.rel (%p602) target = $region28
        $region27: #{tpu_custom_call.1} parent=11 // pred_region
          _
        $region28: #{tpu_custom_call.1} parent=11 // pred_fallthru
          _
        // Predicated region
        $region29: #{tpu_custom_call.1} parent=11 // pred_check
          %p605 = pneg %p216
        $region30: #{tpu_custom_call.1} parent=11 // pred_check_branch
          %607 = sbr.rel (%p605) target = $region32
        $region31: #{tpu_custom_call.1} parent=11 // pred_region
          _
        $region32: #{tpu_custom_call.1} parent=11 // pred_fallthru
          _
        // Predicated region
        $region33: #{tpu_custom_call.1} parent=11 // pred_check
          %p608 = pneg %p237
        $region34: #{tpu_custom_call.1} parent=11 // pred_check_branch
          %610 = sbr.rel (%p608) target = $region36
        $region35: #{tpu_custom_call.1} parent=11 // pred_region
          _
        $region36: #{tpu_custom_call.1} parent=11 // pred_fallthru
          _
        // Predicated region
        $region37: #{tpu_custom_call.1} parent=11 // pred_check
          %p611 = pneg %p258
        $region38: #{tpu_custom_call.1} parent=11 // pred_check_branch
          %613 = sbr.rel (%p611) target = $region40
        $region39: #{tpu_custom_call.1} parent=11 // pred_region
          _
        $region40: #{tpu_custom_call.1} parent=11 // pred_fallthru
          _
        // Predicated region
        $region41: #{tpu_custom_call.1} parent=11 // pred_check
          %p614 = pneg %p279
        $region42: #{tpu_custom_call.1} parent=11 // pred_check_branch
          %616 = sbr.rel (%p614) target = $region44
        $region43: #{tpu_custom_call.1} parent=11 // pred_region
          _
        $region44: #{tpu_custom_call.1} parent=11 // pred_fallthru
          _
        // Predicated region
        $region45: #{tpu_custom_call.1} parent=11 // pred_check
          %p617 = pneg %p300
        $region46: #{tpu_custom_call.1} parent=11 // pred_check_branch
          %619 = sbr.rel (%p617) target = $region48
        $region47: #{tpu_custom_call.1} parent=11 // pred_region
          _
        $region48: #{tpu_custom_call.1} parent=11 // pred_fallthru
          _
        // Predicated region
        $region49: #{tpu_custom_call.1} parent=11 // pred_check
          %p620 = pneg %p321
        $region50: #{tpu_custom_call.1} parent=11 // pred_check_branch
          %622 = sbr.rel (%p620) target = $region52
        $region51: #{tpu_custom_call.1} parent=11 // pred_region
          _
        $region52: #{tpu_custom_call.1} parent=11 // pred_fallthru
          _
        // Predicated region
        $region53: #{tpu_custom_call.1} parent=11 // pred_check
          %p623 = pneg %p342
        $region54: #{tpu_custom_call.1} parent=11 // pred_check_branch
          %625 = sbr.rel (%p623) target = $region56
        $region55: #{tpu_custom_call.1} parent=11 // pred_region
          _
        $region56: #{tpu_custom_call.1} parent=11 // pred_fallthru
          _
        // Predicated region
        $region57: #{tpu_custom_call.1} parent=11 // pred_check
          %p626 = pneg %p363
        $region58: #{tpu_custom_call.1} parent=11 // pred_check_branch
          %628 = sbr.rel (%p626) target = $region60
        $region59: #{tpu_custom_call.1} parent=11 // pred_region
          _
        $region60: #{tpu_custom_call.1} parent=11 // pred_fallthru
          _
        // Predicated region
        $region61: #{tpu_custom_call.1} parent=11 // pred_check
          %p629 = pneg %p384
        $region62: #{tpu_custom_call.1} parent=11 // pred_check_branch
          %631 = sbr.rel (%p629) target = $region64
        $region63: #{tpu_custom_call.1} parent=11 // pred_region
          _
        $region64: #{tpu_custom_call.1} parent=11 // pred_fallthru
          _
        // Predicated region
        $region65: #{tpu_custom_call.1} parent=11 // pred_check
          %p632 = pneg %p405
        $region66: #{tpu_custom_call.1} parent=11 // pred_check_branch
          %634 = sbr.rel (%p632) target = $region68
        $region67: #{tpu_custom_call.1} parent=11 // pred_region
          _
        $region68: #{tpu_custom_call.1} parent=11 // pred_fallthru
          _
        // Predicated region
        $region69: #{tpu_custom_call.1} parent=11 // pred_check
          %p635 = pneg %p426
        $region70: #{tpu_custom_call.1} parent=11 // pred_check_branch
          %637 = sbr.rel (%p635) target = $region72
        $region71: #{tpu_custom_call.1} parent=11 // pred_region
          _
        $region72: #{tpu_custom_call.1} parent=11 // pred_fallthru
          _
        // Predicated region
        $region73: #{tpu_custom_call.1} parent=11 // pred_check
          %p638 = pneg %p447
        $region74: #{tpu_custom_call.1} parent=11 // pred_check_branch
          %640 = sbr.rel (%p638) target = $region76
        $region75: #{tpu_custom_call.1} parent=11 // pred_region
          _
        $region76: #{tpu_custom_call.1} parent=11 // pred_fallthru
          _
        // Predicated region
        $region77: #{tpu_custom_call.1} parent=11 // pred_check
          %p641 = pneg %p468
        $region78: #{tpu_custom_call.1} parent=11 // pred_check_branch
          %643 = sbr.rel (%p641) target = $region80
        $region79: #{tpu_custom_call.1} parent=11 // pred_region
          _
        $region80: #{tpu_custom_call.1} parent=11 // pred_fallthru
          _
        // Predicated region
        $region81: #{tpu_custom_call.1} parent=11 // pred_check
          %p644 = pneg %p489
        $region82: #{tpu_custom_call.1} parent=11 // pred_check_branch
          %646 = sbr.rel (%p644) target = $region84
        $region83: #{tpu_custom_call.1} parent=11 // pred_region
          _
        $region84: #{tpu_custom_call.1} parent=11 // pred_fallthru
          _
        // Predicated region
        $region85: #{tpu_custom_call.1} parent=11 // pred_check
          %p647 = pneg %p510
        $region86: #{tpu_custom_call.1} parent=11 // pred_check_branch
          %649 = sbr.rel (%p647) target = $region88
        $region87: #{tpu_custom_call.1} parent=11 // pred_region
          _
        $region88: #{tpu_custom_call.1} parent=11 // pred_fallthru
          _
        // Predicated region
        $region89: #{tpu_custom_call.1} parent=11 // pred_check
          %p650 = pneg %p531
        $region90: #{tpu_custom_call.1} parent=11 // pred_check_branch
          %652 = sbr.rel (%p650) target = $region92
        $region91: #{tpu_custom_call.1} parent=11 // pred_region
          _
        $region92: #{tpu_custom_call.1} parent=11 // pred_fallthru
          _
        // Predicated region
        $region93: #{tpu_custom_call.1} parent=11 // pred_check
          %p653 = pneg %p552
        $region94: #{tpu_custom_call.1} parent=11 // pred_check_branch
          %655 = sbr.rel (%p653) target = $region96
        $region95: #{tpu_custom_call.1} parent=11 // pred_region
          _
        $region96: #{tpu_custom_call.1} parent=11 // pred_fallthru
          _
      $region12: #{tpu_custom_call.1} parent=5 // pred_fallthru
        _
      %p656 = scmp.lt.s32.totalorder %s33, 2
      // Predicated region
      $region97: #{tpu_custom_call.1} parent=5 // pred_check
        %p657 = pneg %p656
      $region98: #{tpu_custom_call.1} parent=5 // pred_check_branch
        %659 = sbr.rel (%p657) target = $region100
      $region99: #{tpu_custom_call.1} parent=5 // pred_region
        // Predicated region
        $region101: #{tpu_custom_call.1} parent=99 // pred_check
          %p660 = pneg %p53
        $region102: #{tpu_custom_call.1} parent=99 // pred_check_branch
          %662 = sbr.rel (%p660) target = $region104
        $region103: #{tpu_custom_call.1} parent=99 // pred_region
          %p663 = scmp.lt.s32.totalorder %s33, 1
          %s664 = scalar_select %p663, %s33, 1
          %s665 = smul.addr %s664, 8
          %s666 = scalar_lea.vmem %s0, %s665
        $region104: #{tpu_custom_call.1} parent=99 // pred_fallthru
          _
        // Predicated region
        $region105: #{tpu_custom_call.1} parent=99 // pred_check
          %p667 = pneg %p79
        $region106: #{tpu_custom_call.1} parent=99 // pred_check_branch
          %669 = sbr.rel (%p667) target = $region108
        $region107: #{tpu_custom_call.1} parent=99 // pred_region
          %s670 = smul.u32 8, %s33
          %p671 = scmp.lt.s32.totalorder %s670, 15
          %s672 = scalar_select %p671, %s670, 15
          %s673 = smul.addr %s672, 8
          %s674 = scalar_lea.vmem %s1, %s673
          %s675 = smul.u32 8, %s33
        $region108: #{tpu_custom_call.1} parent=99 // pred_fallthru
          _
        // Predicated region
        $region109: #{tpu_custom_call.1} parent=99 // pred_check
          %p676 = pneg %p105
        $region110: #{tpu_custom_call.1} parent=99 // pred_check_branch
          %678 = sbr.rel (%p676) target = $region112
        $region111: #{tpu_custom_call.1} parent=99 // pred_region
          %s679 = smul.u32 8, %s33
          %p680 = scmp.lt.s32.totalorder %s679, 15
          %s681 = scalar_select %p680, %s679, 15
          %s682 = smul.addr %s681, 8
          %s683 = scalar_lea.vmem %s2, %s682
          %s684 = smul.u32 8, %s33
        $region112: #{tpu_custom_call.1} parent=99 // pred_fallthru
          _
      $region100: #{tpu_custom_call.1} parent=5 // pred_fallthru
        _
      %p685 = scmp.le.s32.totalorder 1, %s33
      %p686 = scmp.lt.s32.totalorder %s33, 3
      %p687 = pnand %p685, %p686
      %p688 = pneg %p687
      // Predicated region
      $region113: #{tpu_custom_call.1} parent=5 // pred_check
        _
      $region114: #{tpu_custom_call.1} parent=5 // pred_check_branch
        %690 = sbr.rel (%p687) target = $region116
      $region115: #{tpu_custom_call.1} parent=5 // pred_region
        %s691 = ssub.s32 %s33, 1
        %p692 = scmp.lt.s32.totalorder %s38, 1
        %s693 = scalar_select %p692, %s38, 1
        %s694 = smul.addr %s693, 8
        %s695 = scalar_lea.vmem %s0, %s694
        %p696 = pneg %p59
        %p697 = pneg %p56
        %s698 = smul.u32 8, %s38
        %p699 = scmp.lt.s32.totalorder %s698, 15
        %s700 = scalar_select %p699, %s698, 15
        %s701 = smul.addr %s700, 8
        %s702 = scalar_lea.vmem %s1, %s701
        %p703 = pneg %p85
        %p704 = pneg %p82
        %s705 = smul.u32 8, %s38
        %p706 = scmp.lt.s32.totalorder %s705, 15
        %s707 = scalar_select %p706, %s705, 15
        %s708 = smul.addr %s707, 8
        %s709 = scalar_lea.vmem %s2, %s708
        %p710 = pneg %p111
        %p711 = pneg %p108
        %p712 = pneg %p132
        %p713 = pneg %p129
        %p714 = pneg %p153
        %p715 = pneg %p150
        %p716 = pneg %p174
        %p717 = pneg %p171
        %p718 = pneg %p195
        %p719 = pneg %p192
        %p720 = pneg %p216
        %p721 = pneg %p213
        %p722 = pneg %p237
        %p723 = pneg %p234
        %p724 = pneg %p258
        %p725 = pneg %p255
        %p726 = pneg %p279
        %p727 = pneg %p276
        %p728 = pneg %p300
        %p729 = pneg %p297
        %p730 = pneg %p321
        %p731 = pneg %p318
        %p732 = pneg %p342
        %p733 = pneg %p339
        %p734 = pneg %p363
        %p735 = pneg %p360
        %p736 = pneg %p384
        %p737 = pneg %p381
        %p738 = pneg %p405
        %p739 = pneg %p402
        %p740 = pneg %p426
        %p741 = pneg %p423
        %p742 = pneg %p447
        %p743 = pneg %p444
        %p744 = pneg %p468
        %p745 = pneg %p465
        %p746 = pneg %p489
        %p747 = pneg %p486
        %p748 = pneg %p510
        %p749 = pneg %p507
        %p750 = pneg %p531
        %p751 = pneg %p528
        %p752 = pneg %p552
        %p753 = pneg %p549
        %p754 = pneg %p578
        %p755 = pneg %p575
        %s756 = sand.u32 %s565, 1
        %s757 = scalar_lea.sflag [#allocation3], %s756
        %s758 = sand.u32 %s565, 1
        %s759 = smul.addr %s758, 8
        %s760 = scalar_lea.vmem [#allocation2], %s759
        %p761 = scmp.lt.s32.totalorder %s38, 1
        %s762 = scalar_select %p761, %s38, 1
        %s763 = smul.addr %s762, 8
        %s764 = scalar_lea.vmem %s0, %s763
        %s765 = smul.u32 8, %s38
        %p766 = scmp.lt.s32.totalorder %s765, 15
        %s767 = scalar_select %p766, %s765, 15
        %s768 = smul.addr %s767, 8
        %s769 = scalar_lea.vmem %s1, %s768
        %s770 = smul.u32 8, %s38
        %s771 = smul.u32 8, %s38
        %p772 = scmp.lt.s32.totalorder %s771, 15
        %s773 = scalar_select %p772, %s771, 15
        %s774 = smul.addr %s773, 8
        %s775 = scalar_lea.vmem %s2, %s774
        %s776 = smul.u32 8, %s38
        %v778 = vld [vmem:[%s764] sm:$0xff]
        %vm779 = vcmask 261120
        %v780 = vsel %vm779, %v778, 0.0
        %781 = vadd.xlane.f32.xlu0 %v780
        %v782 = vpop.xlane.xlu0 %781
        %v783 = vrcp.pop 32.0
        %v784 = vmul.f32 %v782, %v783
        %v785 = vsub.f32 %v778, %v784
        %v786 = vmul.f32 %v785, %v785
        %v787 = vsel %vm779, %v786, 0.0
        %788 = vadd.xlane.f32.xlu0 %v787
        %v789 = vpop.xlane.xlu0 %788
        %v790 = vmul.f32 %v789, %v783
        %v791 = vadd.f32 %v790, 1e-06
        %v792 = vrsqrt.pop %v791
        %v793 = vmul.f32 %v785, %v792
        %v794 = vld [vmem:[%s3] sm:$0x1]
        %v796 = vlaneseq
        %v797 = vshrl.u32 %v796, 7
        %v798 = vsub.s32 0, %v797
        %v799 = vrot.slane %v794, %v798
        %v801 = vmul.f32 %v793, %v799
        %v802 = vld [vmem:[%s4] sm:$0x1]
        %v804 = vlaneseq
        %v805 = vshrl.u32 %v804, 7
        %v806 = vsub.s32 0, %v805
        %v807 = vrot.slane %v802, %v806
        %v809 = vadd.f32 %v801, %v807
        %v810 = vpack.c.bf16 %v809, %v809
        %v811 = vld [vmem:[%s5] sm:$0xf]
        %v812 = vld [vmem:[%s5 + $0x4] sm:$0xf]
        %v813 = vld [vmem:[%s5 + $0x8] sm:$0xf]
        %v814 = vld [vmem:[%s5 + $0xc] sm:$0xf]
        %v819 = vunpack.c.l.b16 %v811
        %v820 = vunpack.c.l.b16 %v812
        %v821 = vunpack.c.l.b16 %v813
        %v822 = vunpack.c.l.b16 %v814
        %v823 = vpack.c.b16 %v820, %v819
        %v824 = vpack.c.b16 %v822, %v821
        %v828 = vsel %vm779, %v810, 0
        %830 = vmatprep.subr.bf16.mxu0 0
        %831 = vmatpush1.bf16.msra.mxu0 0
        %832 = vmatprep.subr.bf16.mxu0 0
        %833 = vmatpush1.bf16.msra.mxu0 0
        %834 = vmatprep.subr.bf16.mxu0 0
        %835 = vmatpush1.bf16.msra.mxu0 0
        %836 = vmatprep.subr.bf16.mxu0 0
        %837 = vmatpush1.bf16.msra.mxu0 0
        %838 = vmatprep.subr.bf16.mxu0 0
        %839 = vmatpush1.bf16.msra.mxu0 0
        %840 = vmatprep.subr.bf16.mxu0 0
        %841 = vmatpush1.bf16.msra.mxu0 0
        %842 = vmatprep.subr.bf16.mxu0 0
        %843 = vmatpush1.bf16.msra.mxu0 %v824
        %844 = vmatprep.subr.bf16.mxu0 0
        %845 = vmatpush1.bf16.msra.mxu0 %v823
        %846 = vmatprep.subr.bf16.mxu0 0
        %847 = vmatpush2.bf16.msra.mxu0 0
        %848 = vmatprep.subr.bf16.mxu0 0
        %849 = vmatpush2.bf16.msra.mxu0 0
        %850 = vmatprep.subr.bf16.mxu0 0
        %851 = vmatpush2.bf16.msra.mxu0 0
        %852 = vmatprep.subr.bf16.mxu0 0
        %853 = vmatpush2.bf16.msra.mxu0 0
        %854 = vmatprep.subr.bf16.mxu0 0
        %855 = vmatpush2.bf16.msra.mxu0 0
        %856 = vmatprep.subr.bf16.mxu0 0
        %857 = vmatpush2.bf16.msra.mxu0 0
        %858 = vmatprep.subr.bf16.mxu0 0
        %859 = vmatpush2.bf16.msra.mxu0 0
        %860 = vmatprep.subr.bf16.mxu0 0
        %861 = vmatpush2.bf16.msra.mxu0 0
        %862 = vmatprep.mubr.bf16.mxu0 0
        %863 = vmatmul.mubr.bf16.gmra.mxu0 %v828
        %v864 = vpop.f32.mrf.mxu0
        %v865 = vadd.f32 0.0, %v864
        %v866 = vpop.f32.mrf.mxu0
        %v867 = vpop.f32.mrf.mxu0
        %v868 = vpop.f32.mrf.mxu0
        %869 = vdwg.mxu0
        %v870 = vld [vmem:[%s769] sm:$0xff]
        %v871 = vld [vmem:[%s769 + $0x8] sm:$0xff]
        %v872 = vld [vmem:[%s769 + $0x10] sm:$0xff]
        %v873 = vld [vmem:[%s769 + $0x18] sm:$0xff]
        %v874 = vld [vmem:[%s769 + $0x20] sm:$0xff]
        %v875 = vld [vmem:[%s769 + $0x28] sm:$0xff]
        %v876 = vld [vmem:[%s769 + $0x30] sm:$0xff]
        %v877 = vld [vmem:[%s769 + $0x38] sm:$0xff]
        %v878 = vpack.c.bf16 %v871, %v870
        %v879 = vpack.c.bf16 %v873, %v872
        %v880 = vpack.c.bf16 %v875, %v874
        %v881 = vpack.c.bf16 %v877, %v876
        %v882 = vld [vmem:[%s775] sm:$0xff]
        %v883 = vld [vmem:[%s775 + $0x8] sm:$0xff]
        %v884 = vld [vmem:[%s775 + $0x10] sm:$0xff]
        %v885 = vld [vmem:[%s775 + $0x18] sm:$0xff]
        %v886 = vld [vmem:[%s775 + $0x20] sm:$0xff]
        %v887 = vld [vmem:[%s775 + $0x28] sm:$0xff]
        %v888 = vld [vmem:[%s775 + $0x30] sm:$0xff]
        %v889 = vld [vmem:[%s775 + $0x38] sm:$0xff]
        %v890 = vpack.c.bf16 %v883, %v882
        %v891 = vpack.c.bf16 %v885, %v884
        %v892 = vpack.c.bf16 %v887, %v886
        %v893 = vpack.c.bf16 %v889, %v888
        %v894 = vld [vmem:[%s8] sm:$0x3]
        %v895 = vld [vmem:[%s9] sm:$0x1]
        %v897 = vlaneseq
        %v898 = vshrl.u32 %v897, 7
        %v899 = vsub.s32 0, %v898
        %v900 = vrot.slane %v895, %v899
        %vm902 = vcmask 31744
        %v904 = vsel %vm902, %v890, 0
        %v907 = vsel %vm902, %v891, 0
        %v910 = vsel %vm902, %v892, 0
        %v913 = vsel %vm902, %v893, 0
        %vm915 = vcmask 1041408
        %v917 = vsel %vm915, %v894, 0
        %919 = vmatprep.subr.bf16.mxu0 0
        %920 = vmatpush1.bf16.msra.mxu0 0
        %921 = vmatprep.subr.bf16.mxu0 0
        %922 = vmatpush1.bf16.msra.mxu0 0
        %923 = vmatprep.subr.bf16.mxu0 0
        %924 = vmatpush1.bf16.msra.mxu0 0
        %925 = vmatprep.subr.bf16.mxu0 0
        %926 = vmatpush1.bf16.msra.mxu0 0
        %927 = vmatprep.subr.bf16.mxu0 0
        %928 = vmatpush1.bf16.msra.mxu0 0
        %929 = vmatprep.subr.bf16.mxu0 0
        %930 = vmatpush1.bf16.msra.mxu0 0
        %931 = vmatprep.subr.bf16.mxu0 0
        %932 = vmatpush1.bf16.msra.mxu0 0
        %933 = vmatprep.subr.bf16.mxu0 0
        %934 = vmatpush1.bf16.msra.mxu0 %v917
        %935 = vmatprep.subr.bf16.mxu0 0
        %936 = vmatpush2.bf16.msra.mxu0 0
        %937 = vmatprep.subr.bf16.mxu0 0
        %938 = vmatpush2.bf16.msra.mxu0 0
        %939 = vmatprep.subr.bf16.mxu0 0
        %940 = vmatpush2.bf16.msra.mxu0 0
        %941 = vmatprep.subr.bf16.mxu0 0
        %942 = vmatpush2.bf16.msra.mxu0 0
        %943 = vmatprep.subr.bf16.mxu0 0
        %944 = vmatpush2.bf16.msra.mxu0 0
        %945 = vmatprep.subr.bf16.mxu0 0
        %946 = vmatpush2.bf16.msra.mxu0 0
        %947 = vmatprep.subr.bf16.mxu0 0
        %948 = vmatpush2.bf16.msra.mxu0 0
        %949 = vmatprep.subr.bf16.mxu0 0
        %950 = vmatpush2.bf16.msra.mxu0 0
        %951 = vmatprep.mubr.bf16.mxu0 0
        %952 = vmatmul.mubr.bf16.gmra.mxu0 %v904
        %v953 = vpop.f32.mrf.mxu0
        %v954 = vadd.f32 %v900, %v953
        %v955 = vpop.f32.mrf.mxu0
        %v956 = vpop.f32.mrf.mxu0
        %v957 = vadd.f32 %v900, %v956
        %v958 = vpop.f32.mrf.mxu0
        %959 = vmatprep.mubr.bf16.mxu0 0
        %960 = vmatmul.mubr.bf16.gmra.mxu0 %v907
        %v961 = vpop.f32.mrf.mxu0
        %v962 = vadd.f32 %v900, %v961
        %v963 = vpop.f32.mrf.mxu0
        %v964 = vpop.f32.mrf.mxu0
        %v965 = vadd.f32 %v900, %v964
        %v966 = vpop.f32.mrf.mxu0
        %967 = vmatprep.mubr.bf16.mxu0 0
        %968 = vmatmul.mubr.bf16.gmra.mxu0 %v910
        %v969 = vpop.f32.mrf.mxu0
        %v970 = vadd.f32 %v900, %v969
        %v971 = vpop.f32.mrf.mxu0
        %v972 = vpop.f32.mrf.mxu0
        %v973 = vadd.f32 %v900, %v972
        %v974 = vpop.f32.mrf.mxu0
        %975 = vmatprep.mubr.bf16.mxu0 0
        %976 = vmatmul.mubr.bf16.gmra.mxu0 %v913
        %v977 = vpop.f32.mrf.mxu0
        %v978 = vadd.f32 %v900, %v977
        %v979 = vpop.f32.mrf.mxu0
        %v980 = vpop.f32.mrf.mxu0
        %v981 = vadd.f32 %v900, %v980
        %v982 = vpop.f32.mrf.mxu0
        %983 = vdwg.mxu0
        %v984 = vmax.f32 %v954, 0.0
        %v985 = vmax.f32 %v957, 0.0
        %v986 = vmax.f32 %v962, 0.0
        %v987 = vmax.f32 %v965, 0.0
        %v988 = vmax.f32 %v970, 0.0
        %v989 = vmax.f32 %v973, 0.0
        %v990 = vmax.f32 %v978, 0.0
        %v991 = vmax.f32 %v981, 0.0
        %v992 = vpack.c.bf16 %v985, %v984
        %v993 = vpack.c.bf16 %v987, %v986
        %v994 = vpack.c.bf16 %v989, %v988
        %v995 = vpack.c.bf16 %v991, %v990
        %v996 = vld [vmem:[%s6] sm:$0xf]
        %v997 = vld [vmem:[%s6 + $0x4] sm:$0xf]
        %v998 = vld [vmem:[%s6 + $0x8] sm:$0xf]
        %v999 = vld [vmem:[%s6 + $0xc] sm:$0xf]
        %v1000 = vld [vmem:[%s10] sm:$0xf]
        %v1001 = vld [vmem:[%s10 + $0x4] sm:$0xf]
        %v1002 = vld [vmem:[%s10 + $0x8] sm:$0xf]
        %v1003 = vld [vmem:[%s10 + $0xc] sm:$0xf]
        %v1004 = vld [vmem:[%s10 + $0x10] sm:$0xf]
        %v1005 = vld [vmem:[%s10 + $0x14] sm:$0xf]
        %v1006 = vld [vmem:[%s10 + $0x18] sm:$0xf]
        %v1007 = vld [vmem:[%s10 + $0x1c] sm:$0xf]
        %v1008 = vld [vmem:[%s10 + $0x20] sm:$0xf]
        %v1009 = vld [vmem:[%s10 + $0x24] sm:$0xf]
        %v1010 = vld [vmem:[%s10 + $0x28] sm:$0xf]
        %v1011 = vld [vmem:[%s10 + $0x2c] sm:$0xf]
        %v1012 = vld [vmem:[%s10 + $0x30] sm:$0xf]
        %v1013 = vld [vmem:[%s10 + $0x34] sm:$0xf]
        %v1014 = vld [vmem:[%s10 + $0x38] sm:$0xf]
        %v1015 = vld [vmem:[%s10 + $0x3c] sm:$0xf]
        %v1016 = vld [vmem:[%s11] sm:$0x1]
        %v1018 = vlaneseq
        %v1019 = vshrl.u32 %v1018, 7
        %v1020 = vsub.s32 0, %v1019
        %v1021 = vrot.slane %v1016, %v1020
        %v1039 = vunpack.c.l.b16 %v1000
        %v1040 = vunpack.c.l.b16 %v1001
        %v1041 = vunpack.c.l.b16 %v1002
        %v1042 = vunpack.c.l.b16 %v1003
        %v1043 = vunpack.c.l.b16 %v1004
        %v1044 = vunpack.c.l.b16 %v1005
        %v1045 = vunpack.c.l.b16 %v1006
        %v1046 = vunpack.c.l.b16 %v1007
        %v1047 = vunpack.c.l.b16 %v1008
        %v1048 = vunpack.c.l.b16 %v1009
        %v1049 = vunpack.c.l.b16 %v1010
        %v1050 = vunpack.c.l.b16 %v1011
        %v1051 = vunpack.c.l.b16 %v1012
        %v1052 = vunpack.c.l.b16 %v1013
        %v1053 = vunpack.c.l.b16 %v1014
        %v1054 = vunpack.c.l.b16 %v1015
        %v1055 = vpack.c.b16 %v1040, %v1039
        %v1056 = vpack.c.b16 %v1042, %v1041
        %v1057 = vpack.c.b16 %v1044, %v1043
        %v1058 = vpack.c.b16 %v1046, %v1045
        %v1059 = vpack.c.b16 %v1048, %v1047
        %v1060 = vpack.c.b16 %v1050, %v1049
        %v1061 = vpack.c.b16 %v1052, %v1051
        %v1062 = vpack.c.b16 %v1054, %v1053
        %1071 = vmatprep.subr.bf16.mxu0 0
        %1072 = vmatpush1.bf16.msra.mxu0 %v1062
        %1073 = vmatprep.subr.bf16.mxu0 0
        %1074 = vmatpush1.bf16.msra.mxu0 %v1061
        %1075 = vmatprep.subr.bf16.mxu0 0
        %1076 = vmatpush1.bf16.msra.mxu0 %v1060
        %1077 = vmatprep.subr.bf16.mxu0 0
        %1078 = vmatpush1.bf16.msra.mxu0 %v1059
        %1079 = vmatprep.subr.bf16.mxu0 0
        %1080 = vmatpush1.bf16.msra.mxu0 %v1058
        %1081 = vmatprep.subr.bf16.mxu0 0
        %1082 = vmatpush1.bf16.msra.mxu0 %v1057
        %1083 = vmatprep.subr.bf16.mxu0 0
        %1084 = vmatpush1.bf16.msra.mxu0 %v1056
        %1085 = vmatprep.subr.bf16.mxu0 0
        %1086 = vmatpush1.bf16.msra.mxu0 %v1055
        %1087 = vmatprep.subr.bf16.mxu0 0
        %1088 = vmatpush2.bf16.msra.mxu0 0
        %1089 = vmatprep.subr.bf16.mxu0 0
        %1090 = vmatpush2.bf16.msra.mxu0 0
        %1091 = vmatprep.subr.bf16.mxu0 0
        %1092 = vmatpush2.bf16.msra.mxu0 0
        %1093 = vmatprep.subr.bf16.mxu0 0
        %1094 = vmatpush2.bf16.msra.mxu0 0
        %1095 = vmatprep.subr.bf16.mxu0 0
        %1096 = vmatpush2.bf16.msra.mxu0 0
        %1097 = vmatprep.subr.bf16.mxu0 0
        %1098 = vmatpush2.bf16.msra.mxu0 0
        %1099 = vmatprep.subr.bf16.mxu0 0
        %1100 = vmatpush2.bf16.msra.mxu0 0
        %1101 = vmatprep.subr.bf16.mxu0 0
        %1102 = vmatpush2.bf16.msra.mxu0 0
        %1103 = vmatprep.mubr.bf16.mxu0 0
        %1104 = vmatmul.mubr.bf16.gmra.mxu0 %v992
        %v1105 = vpop.f32.mrf.mxu0
        %v1106 = vadd.f32 %v1021, %v1105
        %v1107 = vpop.f32.mrf.mxu0
        %v1108 = vpop.f32.mrf.mxu0
        %v1109 = vadd.f32 %v1021, %v1108
        %v1110 = vpop.f32.mrf.mxu0
        %1111 = vmatprep.mubr.bf16.mxu0 0
        %1112 = vmatmul.mubr.bf16.gmra.mxu0 %v993
        %v1113 = vpop.f32.mrf.mxu0
        %v1114 = vadd.f32 %v1021, %v1113
        %v1115 = vpop.f32.mrf.mxu0
        %v1116 = vpop.f32.mrf.mxu0
        %v1117 = vadd.f32 %v1021, %v1116
        %v1118 = vpop.f32.mrf.mxu0
        %1119 = vmatprep.mubr.bf16.mxu0 0
        %1120 = vmatmul.mubr.bf16.gmra.mxu0 %v994
        %v1121 = vpop.f32.mrf.mxu0
        %v1122 = vadd.f32 %v1021, %v1121
        %v1123 = vpop.f32.mrf.mxu0
        %v1124 = vpop.f32.mrf.mxu0
        %v1125 = vadd.f32 %v1021, %v1124
        %v1126 = vpop.f32.mrf.mxu0
        %1127 = vmatprep.mubr.bf16.mxu0 0
        %1128 = vmatmul.mubr.bf16.gmra.mxu0 %v995
        %v1129 = vpop.f32.mrf.mxu0
        %v1130 = vadd.f32 %v1021, %v1129
        %v1131 = vpop.f32.mrf.mxu0
        %v1132 = vpop.f32.mrf.mxu0
        %v1133 = vadd.f32 %v1021, %v1132
        %v1134 = vpop.f32.mrf.mxu0
        %1135 = vdwg.mxu0
        %v1140 = vunpack.c.l.b16 %v996
        %v1141 = vunpack.c.l.b16 %v997
        %v1142 = vunpack.c.l.b16 %v998
        %v1143 = vunpack.c.l.b16 %v999
        %v1144 = vpack.c.b16 %v1141, %v1140
        %v1145 = vpack.c.b16 %v1143, %v1142
        %v1149 = vsel %vm779, %v878, 0
        %v1152 = vsel %vm779, %v879, 0
        %v1155 = vsel %vm779, %v880, 0
        %v1158 = vsel %vm779, %v881, 0
        %1160 = vmatprep.subr.bf16.mxu0 0
        %1161 = vmatpush1.bf16.msra.mxu0 0
        %1162 = vmatprep.subr.bf16.mxu0 0
        %1163 = vmatpush1.bf16.msra.mxu0 0
        %1164 = vmatprep.subr.bf16.mxu0 0
        %1165 = vmatpush1.bf16.msra.mxu0 0
        %1166 = vmatprep.subr.bf16.mxu0 0
        %1167 = vmatpush1.bf16.msra.mxu0 0
        %1168 = vmatprep.subr.bf16.mxu0 0
        %1169 = vmatpush1.bf16.msra.mxu0 0
        %1170 = vmatprep.subr.bf16.mxu0 0
        %1171 = vmatpush1.bf16.msra.mxu0 0
        %1172 = vmatprep.subr.bf16.mxu0 0
        %1173 = vmatpush1.bf16.msra.mxu0 %v1145
        %1174 = vmatprep.subr.bf16.mxu0 0
        %1175 = vmatpush1.bf16.msra.mxu0 %v1144
        %1176 = vmatprep.subr.bf16.mxu0 0
        %1177 = vmatpush2.bf16.msra.mxu0 0
        %1178 = vmatprep.subr.bf16.mxu0 0
        %1179 = vmatpush2.bf16.msra.mxu0 0
        %1180 = vmatprep.subr.bf16.mxu0 0
        %1181 = vmatpush2.bf16.msra.mxu0 0
        %1182 = vmatprep.subr.bf16.mxu0 0
        %1183 = vmatpush2.bf16.msra.mxu0 0
        %1184 = vmatprep.subr.bf16.mxu0 0
        %1185 = vmatpush2.bf16.msra.mxu0 0
        %1186 = vmatprep.subr.bf16.mxu0 0
        %1187 = vmatpush2.bf16.msra.mxu0 0
        %1188 = vmatprep.subr.bf16.mxu0 0
        %1189 = vmatpush2.bf16.msra.mxu0 0
        %1190 = vmatprep.subr.bf16.mxu0 0
        %1191 = vmatpush2.bf16.msra.mxu0 0
        %1192 = vmatprep.mubr.bf16.mxu0 0
        %1193 = vmatmul.mubr.bf16.gmra.mxu0 %v1149
        %v1194 = vpop.f32.mrf.mxu0
        %v1195 = vadd.f32 %v1106, %v1194
        %v1196 = vpop.f32.mrf.mxu0
        %v1197 = vpop.f32.mrf.mxu0
        %v1198 = vadd.f32 %v1109, %v1197
        %v1199 = vpop.f32.mrf.mxu0
        %1200 = vmatprep.mubr.bf16.mxu0 0
        %1201 = vmatmul.mubr.bf16.gmra.mxu0 %v1152
        %v1202 = vpop.f32.mrf.mxu0
        %v1203 = vadd.f32 %v1114, %v1202
        %v1204 = vpop.f32.mrf.mxu0
        %v1205 = vpop.f32.mrf.mxu0
        %v1206 = vadd.f32 %v1117, %v1205
        %v1207 = vpop.f32.mrf.mxu0
        %1208 = vmatprep.mubr.bf16.mxu0 0
        %1209 = vmatmul.mubr.bf16.gmra.mxu0 %v1155
        %v1210 = vpop.f32.mrf.mxu0
        %v1211 = vadd.f32 %v1122, %v1210
        %v1212 = vpop.f32.mrf.mxu0
        %v1213 = vpop.f32.mrf.mxu0
        %v1214 = vadd.f32 %v1125, %v1213
        %v1215 = vpop.f32.mrf.mxu0
        %1216 = vmatprep.mubr.bf16.mxu0 0
        %1217 = vmatmul.mubr.bf16.gmra.mxu0 %v1158
        %v1218 = vpop.f32.mrf.mxu0
        %v1219 = vadd.f32 %v1130, %v1218
        %v1220 = vpop.f32.mrf.mxu0
        %v1221 = vpop.f32.mrf.mxu0
        %v1222 = vadd.f32 %v1133, %v1221
        %v1223 = vpop.f32.mrf.mxu0
        %1224 = vdwg.mxu0
        %v1226 = vcombine.high %v865, %v865
        %v1228 = vunpack.c.l.s4 1966171168
        %v1229 = vunpack.c.0.s8 %v1228
        %v1230 = vlaneseq
        %v1231 = vshrl.u32 %v1230, 7
        %v1232 = vsub.s32 %v1229, %v1231
        %v1233 = vrot.slane %v865, %v1232
        %v1235 = vunpack.c.l.s4 1966171168
        %v1236 = vunpack.c.0.s8 %v1235
        %v1237 = vlaneseq
        %v1238 = vshrl.u32 %v1237, 7
        %v1239 = vsub.s32 %v1236, %v1238
        %v1240 = vrot.slane %v1226, %v1239
        %v1241 = vcombine.high %v1233, %v1233
        %v1242 = vcombine.high %v1240, %v1240
        %v1244 = vunpack.c.l.s4 1966171168
        %v1245 = vunpack.c.0.s8 %v1244
        %v1246 = vlaneseq
        %v1247 = vshrl.u32 %v1246, 7
        %v1248 = vsub.s32 %v1245, %v1247
        %v1249 = vrot.slane %v1233, %v1248
        %v1251 = vunpack.c.l.s4 1966171168
        %v1252 = vunpack.c.0.s8 %v1251
        %v1253 = vlaneseq
        %v1254 = vshrl.u32 %v1253, 7
        %v1255 = vsub.s32 %v1252, %v1254
        %v1256 = vrot.slane %v1240, %v1255
        %v1258 = vunpack.c.l.s4 1966171168
        %v1259 = vunpack.c.0.s8 %v1258
        %v1260 = vlaneseq
        %v1261 = vshrl.u32 %v1260, 7
        %v1262 = vsub.s32 %v1259, %v1261
        %v1263 = vrot.slane %v1241, %v1262
        %v1265 = vunpack.c.l.s4 1966171168
        %v1266 = vunpack.c.0.s8 %v1265
        %v1267 = vlaneseq
        %v1268 = vshrl.u32 %v1267, 7
        %v1269 = vsub.s32 %v1266, %v1268
        %v1270 = vrot.slane %v1242, %v1269
        %v1271 = vcombine.high %v1249, %v1249
        %v1272 = vcombine.high %v1256, %v1256
        %v1273 = vcombine.high %v1263, %v1263
        %v1274 = vcombine.high %v1270, %v1270
        %v1275 = vlaneseq
        %v1276 = vshrl.u32 %v1275, 7
        %v1277 = vsub.s32 0, %v1276
        %v1278 = vrot.slane %v1249, %v1277
        %v1279 = vlaneseq
        %v1280 = vshrl.u32 %v1279, 7
        %v1281 = vsub.s32 0, %v1280
        %v1282 = vrot.slane %v1263, %v1281
        %v1283 = vlaneseq
        %v1284 = vshrl.u32 %v1283, 7
        %v1285 = vsub.s32 0, %v1284
        %v1286 = vrot.slane %v1271, %v1285
        %v1287 = vlaneseq
        %v1288 = vshrl.u32 %v1287, 7
        %v1289 = vsub.s32 0, %v1288
        %v1290 = vrot.slane %v1273, %v1289
        %v1291 = vlaneseq
        %v1292 = vshrl.u32 %v1291, 7
        %v1293 = vsub.s32 0, %v1292
        %v1294 = vrot.slane %v1256, %v1293
        %v1295 = vlaneseq
        %v1296 = vshrl.u32 %v1295, 7
        %v1297 = vsub.s32 0, %v1296
        %v1298 = vrot.slane %v1270, %v1297
        %v1299 = vlaneseq
        %v1300 = vshrl.u32 %v1299, 7
        %v1301 = vsub.s32 0, %v1300
        %v1302 = vrot.slane %v1272, %v1301
        %v1303 = vlaneseq
        %v1304 = vshrl.u32 %v1303, 7
        %v1305 = vsub.s32 0, %v1304
        %v1306 = vrot.slane %v1274, %v1305
        %v1315 = vsub.f32 %v1195, %v1278
        %v1316 = vsub.f32 %v1198, %v1282
        %v1317 = vsub.f32 %v1203, %v1286
        %v1318 = vsub.f32 %v1206, %v1290
        %v1319 = vsub.f32 %v1211, %v1294
        %v1320 = vsub.f32 %v1214, %v1298
        %v1321 = vsub.f32 %v1219, %v1302
        %v1322 = vsub.f32 %v1222, %v1306
        %v1323 = vmax.f32 %v1315, 0.0
        %v1324 = vmax.f32 %v1316, 0.0
        %v1325 = vmax.f32 %v1317, 0.0
        %v1326 = vmax.f32 %v1318, 0.0
        %v1327 = vmax.f32 %v1319, 0.0
        %v1328 = vmax.f32 %v1320, 0.0
        %v1329 = vmax.f32 %v1321, 0.0
        %v1330 = vmax.f32 %v1322, 0.0
        %v1331 = vpack.c.bf16 %v1324, %v1323
        %v1332 = vpack.c.bf16 %v1326, %v1325
        %v1333 = vpack.c.bf16 %v1328, %v1327
        %v1334 = vpack.c.bf16 %v1330, %v1329
        %v1335 = vld [vmem:[%s14] sm:$0xf]
        %v1336 = vld [vmem:[%s14 + $0x4] sm:$0xf]
        %v1337 = vld [vmem:[%s14 + $0x8] sm:$0xf]
        %v1338 = vld [vmem:[%s14 + $0xc] sm:$0xf]
        %v1339 = vld [vmem:[%s14 + $0x10] sm:$0xf]
        %v1340 = vld [vmem:[%s14 + $0x14] sm:$0xf]
        %v1341 = vld [vmem:[%s14 + $0x18] sm:$0xf]
        %v1342 = vld [vmem:[%s14 + $0x1c] sm:$0xf]
        %v1343 = vld [vmem:[%s14 + $0x20] sm:$0xf]
        %v1344 = vld [vmem:[%s14 + $0x24] sm:$0xf]
        %v1345 = vld [vmem:[%s14 + $0x28] sm:$0xf]
        %v1346 = vld [vmem:[%s14 + $0x2c] sm:$0xf]
        %v1347 = vld [vmem:[%s14 + $0x30] sm:$0xf]
        %v1348 = vld [vmem:[%s14 + $0x34] sm:$0xf]
        %v1349 = vld [vmem:[%s14 + $0x38] sm:$0xf]
        %v1350 = vld [vmem:[%s14 + $0x3c] sm:$0xf]
        %v1351 = vld [vmem:[%s15] sm:$0x1]
        %v1353 = vlaneseq
        %v1354 = vshrl.u32 %v1353, 7
        %v1355 = vsub.s32 0, %v1354
        %v1356 = vrot.slane %v1351, %v1355
        %v1374 = vunpack.c.l.b16 %v1335
        %v1375 = vunpack.c.l.b16 %v1336
        %v1376 = vunpack.c.l.b16 %v1337
        %v1377 = vunpack.c.l.b16 %v1338
        %v1378 = vunpack.c.l.b16 %v1339
        %v1379 = vunpack.c.l.b16 %v1340
        %v1380 = vunpack.c.l.b16 %v1341
        %v1381 = vunpack.c.l.b16 %v1342
        %v1382 = vunpack.c.l.b16 %v1343
        %v1383 = vunpack.c.l.b16 %v1344
        %v1384 = vunpack.c.l.b16 %v1345
        %v1385 = vunpack.c.l.b16 %v1346
        %v1386 = vunpack.c.l.b16 %v1347
        %v1387 = vunpack.c.l.b16 %v1348
        %v1388 = vunpack.c.l.b16 %v1349
        %v1389 = vunpack.c.l.b16 %v1350
        %v1390 = vpack.c.b16 %v1375, %v1374
        %v1391 = vpack.c.b16 %v1377, %v1376
        %v1392 = vpack.c.b16 %v1379, %v1378
        %v1393 = vpack.c.b16 %v1381, %v1380
        %v1394 = vpack.c.b16 %v1383, %v1382
        %v1395 = vpack.c.b16 %v1385, %v1384
        %v1396 = vpack.c.b16 %v1387, %v1386
        %v1397 = vpack.c.b16 %v1389, %v1388
        %1406 = vmatprep.subr.bf16.mxu0 0
        %1407 = vmatpush1.bf16.msra.mxu0 %v1397
        %1408 = vmatprep.subr.bf16.mxu0 0
        %1409 = vmatpush1.bf16.msra.mxu0 %v1396
        %1410 = vmatprep.subr.bf16.mxu0 0
        %1411 = vmatpush1.bf16.msra.mxu0 %v1395
        %1412 = vmatprep.subr.bf16.mxu0 0
        %1413 = vmatpush1.bf16.msra.mxu0 %v1394
        %1414 = vmatprep.subr.bf16.mxu0 0
        %1415 = vmatpush1.bf16.msra.mxu0 %v1393
        %1416 = vmatprep.subr.bf16.mxu0 0
        %1417 = vmatpush1.bf16.msra.mxu0 %v1392
        %1418 = vmatprep.subr.bf16.mxu0 0
        %1419 = vmatpush1.bf16.msra.mxu0 %v1391
        %1420 = vmatprep.subr.bf16.mxu0 0
        %1421 = vmatpush1.bf16.msra.mxu0 %v1390
        %1422 = vmatprep.subr.bf16.mxu0 0
        %1423 = vmatpush2.bf16.msra.mxu0 0
        %1424 = vmatprep.subr.bf16.mxu0 0
        %1425 = vmatpush2.bf16.msra.mxu0 0
        %1426 = vmatprep.subr.bf16.mxu0 0
        %1427 = vmatpush2.bf16.msra.mxu0 0
        %1428 = vmatprep.subr.bf16.mxu0 0
        %1429 = vmatpush2.bf16.msra.mxu0 0
        %1430 = vmatprep.subr.bf16.mxu0 0
        %1431 = vmatpush2.bf16.msra.mxu0 0
        %1432 = vmatprep.subr.bf16.mxu0 0
        %1433 = vmatpush2.bf16.msra.mxu0 0
        %1434 = vmatprep.subr.bf16.mxu0 0
        %1435 = vmatpush2.bf16.msra.mxu0 0
        %1436 = vmatprep.subr.bf16.mxu0 0
        %1437 = vmatpush2.bf16.msra.mxu0 0
        %1438 = vmatprep.mubr.bf16.mxu0 0
        %1439 = vmatmul.mubr.bf16.gmra.mxu0 %v1331
        %v1440 = vpop.f32.mrf.mxu0
        %v1441 = vadd.f32 %v1356, %v1440
        %v1442 = vpop.f32.mrf.mxu0
        %v1443 = vpop.f32.mrf.mxu0
        %v1444 = vadd.f32 %v1356, %v1443
        %v1445 = vpop.f32.mrf.mxu0
        %1446 = vmatprep.mubr.bf16.mxu0 0
        %1447 = vmatmul.mubr.bf16.gmra.mxu0 %v1332
        %v1448 = vpop.f32.mrf.mxu0
        %v1449 = vadd.f32 %v1356, %v1448
        %v1450 = vpop.f32.mrf.mxu0
        %v1451 = vpop.f32.mrf.mxu0
        %v1452 = vadd.f32 %v1356, %v1451
        %v1453 = vpop.f32.mrf.mxu0
        %1454 = vmatprep.mubr.bf16.mxu0 0
        %1455 = vmatmul.mubr.bf16.gmra.mxu0 %v1333
        %v1456 = vpop.f32.mrf.mxu0
        %v1457 = vadd.f32 %v1356, %v1456
        %v1458 = vpop.f32.mrf.mxu0
        %v1459 = vpop.f32.mrf.mxu0
        %v1460 = vadd.f32 %v1356, %v1459
        %v1461 = vpop.f32.mrf.mxu0
        %1462 = vmatprep.mubr.bf16.mxu0 0
        %1463 = vmatmul.mubr.bf16.gmra.mxu0 %v1334
        %v1464 = vpop.f32.mrf.mxu0
        %v1465 = vadd.f32 %v1356, %v1464
        %v1466 = vpop.f32.mrf.mxu0
        %v1467 = vpop.f32.mrf.mxu0
        %v1468 = vadd.f32 %v1356, %v1467
        %v1469 = vpop.f32.mrf.mxu0
        %1470 = vdwg.mxu0
        %v1471 = vsel %vm779, %v1441, -inf
        %v1472 = vrot.slane %v1471, 4
        %v1473 = vmax.f32 %v1471, %v1472
        %v1474 = vrot.slane %v1473, 2
        %v1475 = vmax.f32 %v1473, %v1474
        %v1476 = vrot.slane %v1475, 1
        %v1477 = vmax.f32 %v1475, %v1476
        %v1478 = vsel %vm779, %v1444, -inf
        %v1479 = vrot.slane %v1478, 4
        %v1480 = vmax.f32 %v1478, %v1479
        %v1481 = vrot.slane %v1480, 2
        %v1482 = vmax.f32 %v1480, %v1481
        %v1483 = vrot.slane %v1482, 1
        %v1484 = vmax.f32 %v1482, %v1483
        %v1485 = vsel %vm779, %v1449, -inf
        %v1486 = vrot.slane %v1485, 4
        %v1487 = vmax.f32 %v1485, %v1486
        %v1488 = vrot.slane %v1487, 2
        %v1489 = vmax.f32 %v1487, %v1488
        %v1490 = vrot.slane %v1489, 1
        %v1491 = vmax.f32 %v1489, %v1490
        %v1492 = vsel %vm779, %v1452, -inf
        %v1493 = vrot.slane %v1492, 4
        %v1494 = vmax.f32 %v1492, %v1493
        %v1495 = vrot.slane %v1494, 2
        %v1496 = vmax.f32 %v1494, %v1495
        %v1497 = vrot.slane %v1496, 1
        %v1498 = vmax.f32 %v1496, %v1497
        %v1499 = vsel %vm779, %v1457, -inf
        %v1500 = vrot.slane %v1499, 4
        %v1501 = vmax.f32 %v1499, %v1500
        %v1502 = vrot.slane %v1501, 2
        %v1503 = vmax.f32 %v1501, %v1502
        %v1504 = vrot.slane %v1503, 1
        %v1505 = vmax.f32 %v1503, %v1504
        %v1506 = vsel %vm779, %v1460, -inf
        %v1507 = vrot.slane %v1506, 4
        %v1508 = vmax.f32 %v1506, %v1507
        %v1509 = vrot.slane %v1508, 2
        %v1510 = vmax.f32 %v1508, %v1509
        %v1511 = vrot.slane %v1510, 1
        %v1512 = vmax.f32 %v1510, %v1511
        %v1513 = vsel %vm779, %v1465, -inf
        %v1514 = vrot.slane %v1513, 4
        %v1515 = vmax.f32 %v1513, %v1514
        %v1516 = vrot.slane %v1515, 2
        %v1517 = vmax.f32 %v1515, %v1516
        %v1518 = vrot.slane %v1517, 1
        %v1519 = vmax.f32 %v1517, %v1518
        %v1520 = vsel %vm779, %v1468, -inf
        %v1521 = vrot.slane %v1520, 4
        %v1522 = vmax.f32 %v1520, %v1521
        %v1523 = vrot.slane %v1522, 2
        %v1524 = vmax.f32 %v1522, %v1523
        %v1525 = vrot.slane %v1524, 1
        %v1526 = vmax.f32 %v1524, %v1525
        %v1527 = vsub.f32 %v1441, %v1477
        %v1528 = vsub.f32 %v1444, %v1484
        %v1529 = vsub.f32 %v1449, %v1491
        %v1530 = vsub.f32 %v1452, %v1498
        %v1531 = vsub.f32 %v1457, %v1505
        %v1532 = vsub.f32 %v1460, %v1512
        %v1533 = vsub.f32 %v1465, %v1519
        %v1534 = vsub.f32 %v1468, %v1526
        %v1535 = vmul.f32 %v1527, 1.442695
        %v1536 = vpow.pop %v1535
        %v1537 = vmul.f32 %v1528, 1.442695
        %v1538 = vpow.pop %v1537
        %v1539 = vmul.f32 %v1529, 1.442695
        %v1540 = vpow.pop %v1539
        %v1541 = vmul.f32 %v1530, 1.442695
        %v1542 = vpow.pop %v1541
        %v1543 = vmul.f32 %v1531, 1.442695
        %v1544 = vpow.pop %v1543
        %v1545 = vmul.f32 %v1532, 1.442695
        %v1546 = vpow.pop %v1545
        %v1547 = vmul.f32 %v1533, 1.442695
        %v1548 = vpow.pop %v1547
        %v1549 = vmul.f32 %v1534, 1.442695
        %v1550 = vpow.pop %v1549
        %v1551 = vsel %vm779, %v1536, 0.0
        %v1552 = vrot.slane %v1551, 4
        %v1553 = vadd.f32 %v1551, %v1552
        %v1554 = vrot.slane %v1553, 2
        %v1555 = vadd.f32 %v1553, %v1554
        %v1556 = vrot.slane %v1555, 1
        %v1557 = vadd.f32 %v1555, %v1556
        %v1558 = vsel %vm779, %v1538, 0.0
        %v1559 = vrot.slane %v1558, 4
        %v1560 = vadd.f32 %v1558, %v1559
        %v1561 = vrot.slane %v1560, 2
        %v1562 = vadd.f32 %v1560, %v1561
        %v1563 = vrot.slane %v1562, 1
        %v1564 = vadd.f32 %v1562, %v1563
        %v1565 = vsel %vm779, %v1540, 0.0
        %v1566 = vrot.slane %v1565, 4
        %v1567 = vadd.f32 %v1565, %v1566
        %v1568 = vrot.slane %v1567, 2
        %v1569 = vadd.f32 %v1567, %v1568
        %v1570 = vrot.slane %v1569, 1
        %v1571 = vadd.f32 %v1569, %v1570
        %v1572 = vsel %vm779, %v1542, 0.0
        %v1573 = vrot.slane %v1572, 4
        %v1574 = vadd.f32 %v1572, %v1573
        %v1575 = vrot.slane %v1574, 2
        %v1576 = vadd.f32 %v1574, %v1575
        %v1577 = vrot.slane %v1576, 1
        %v1578 = vadd.f32 %v1576, %v1577
        %v1579 = vsel %vm779, %v1544, 0.0
        %v1580 = vrot.slane %v1579, 4
        %v1581 = vadd.f32 %v1579, %v1580
        %v1582 = vrot.slane %v1581, 2
        %v1583 = vadd.f32 %v1581, %v1582
        %v1584 = vrot.slane %v1583, 1
        %v1585 = vadd.f32 %v1583, %v1584
        %v1586 = vsel %vm779, %v1546, 0.0
        %v1587 = vrot.slane %v1586, 4
        %v1588 = vadd.f32 %v1586, %v1587
        %v1589 = vrot.slane %v1588, 2
        %v1590 = vadd.f32 %v1588, %v1589
        %v1591 = vrot.slane %v1590, 1
        %v1592 = vadd.f32 %v1590, %v1591
        %v1593 = vsel %vm779, %v1548, 0.0
        %v1594 = vrot.slane %v1593, 4
        %v1595 = vadd.f32 %v1593, %v1594
        %v1596 = vrot.slane %v1595, 2
        %v1597 = vadd.f32 %v1595, %v1596
        %v1598 = vrot.slane %v1597, 1
        %v1599 = vadd.f32 %v1597, %v1598
        %v1600 = vsel %vm779, %v1550, 0.0
        %v1601 = vrot.slane %v1600, 4
        %v1602 = vadd.f32 %v1600, %v1601
        %v1603 = vrot.slane %v1602, 2
        %v1604 = vadd.f32 %v1602, %v1603
        %v1605 = vrot.slane %v1604, 1
        %v1606 = vadd.f32 %v1604, %v1605
        %v1607 = vrcp.pop %v1557
        %v1608 = vrcp.pop %v1564
        %v1609 = vrcp.pop %v1571
        %v1610 = vrcp.pop %v1578
        %v1611 = vrcp.pop %v1585
        %v1612 = vrcp.pop %v1592
        %v1613 = vrcp.pop %v1599
        %v1614 = vrcp.pop %v1606
        %v1615 = vmul.f32 %v1536, %v1607
        %v1616 = vmul.f32 %v1538, %v1608
        %v1617 = vmul.f32 %v1540, %v1609
        %v1618 = vmul.f32 %v1542, %v1610
        %v1619 = vmul.f32 %v1544, %v1611
        %v1620 = vmul.f32 %v1546, %v1612
        %v1621 = vmul.f32 %v1548, %v1613
        %v1622 = vmul.f32 %v1550, %v1614
        %v1623 = vld [vmem:[%s7] sm:$0xf]
        %v1624 = vld [vmem:[%s7 + $0x4] sm:$0xf]
        %v1625 = vld [vmem:[%s7 + $0x8] sm:$0xf]
        %v1626 = vld [vmem:[%s7 + $0xc] sm:$0xf]
        %v1627 = vld [vmem:[%s12] sm:$0xf]
        %v1628 = vld [vmem:[%s12 + $0x4] sm:$0xf]
        %v1629 = vld [vmem:[%s12 + $0x8] sm:$0xf]
        %v1630 = vld [vmem:[%s12 + $0xc] sm:$0xf]
        %v1631 = vld [vmem:[%s12 + $0x10] sm:$0xf]
        %v1632 = vld [vmem:[%s12 + $0x14] sm:$0xf]
        %v1633 = vld [vmem:[%s12 + $0x18] sm:$0xf]
        %v1634 = vld [vmem:[%s12 + $0x1c] sm:$0xf]
        %v1635 = vld [vmem:[%s12 + $0x20] sm:$0xf]
        %v1636 = vld [vmem:[%s12 + $0x24] sm:$0xf]
        %v1637 = vld [vmem:[%s12 + $0x28] sm:$0xf]
        %v1638 = vld [vmem:[%s12 + $0x2c] sm:$0xf]
        %v1639 = vld [vmem:[%s12 + $0x30] sm:$0xf]
        %v1640 = vld [vmem:[%s12 + $0x34] sm:$0xf]
        %v1641 = vld [vmem:[%s12 + $0x38] sm:$0xf]
        %v1642 = vld [vmem:[%s12 + $0x3c] sm:$0xf]
        %v1643 = vld [vmem:[%s13] sm:$0x1]
        %v1645 = vlaneseq
        %v1646 = vshrl.u32 %v1645, 7
        %v1647 = vsub.s32 0, %v1646
        %v1648 = vrot.slane %v1643, %v1647
        %v1666 = vunpack.c.l.b16 %v1627
        %v1667 = vunpack.c.l.b16 %v1628
        %v1668 = vunpack.c.l.b16 %v1629
        %v1669 = vunpack.c.l.b16 %v1630
        %v1670 = vunpack.c.l.b16 %v1631
        %v1671 = vunpack.c.l.b16 %v1632
        %v1672 = vunpack.c.l.b16 %v1633
        %v1673 = vunpack.c.l.b16 %v1634
        %v1674 = vunpack.c.l.b16 %v1635
        %v1675 = vunpack.c.l.b16 %v1636
        %v1676 = vunpack.c.l.b16 %v1637
        %v1677 = vunpack.c.l.b16 %v1638
        %v1678 = vunpack.c.l.b16 %v1639
        %v1679 = vunpack.c.l.b16 %v1640
        %v1680 = vunpack.c.l.b16 %v1641
        %v1681 = vunpack.c.l.b16 %v1642
        %v1682 = vpack.c.b16 %v1667, %v1666
        %v1683 = vpack.c.b16 %v1669, %v1668
        %v1684 = vpack.c.b16 %v1671, %v1670
        %v1685 = vpack.c.b16 %v1673, %v1672
        %v1686 = vpack.c.b16 %v1675, %v1674
        %v1687 = vpack.c.b16 %v1677, %v1676
        %v1688 = vpack.c.b16 %v1679, %v1678
        %v1689 = vpack.c.b16 %v1681, %v1680
        %1698 = vmatprep.subr.bf16.mxu0 0
        %1699 = vmatpush1.bf16.msra.mxu0 %v1689
        %1700 = vmatprep.subr.bf16.mxu0 0
        %1701 = vmatpush1.bf16.msra.mxu0 %v1688
        %1702 = vmatprep.subr.bf16.mxu0 0
        %1703 = vmatpush1.bf16.msra.mxu0 %v1687
        %1704 = vmatprep.subr.bf16.mxu0 0
        %1705 = vmatpush1.bf16.msra.mxu0 %v1686
        %1706 = vmatprep.subr.bf16.mxu0 0
        %1707 = vmatpush1.bf16.msra.mxu0 %v1685
        %1708 = vmatprep.subr.bf16.mxu0 0
        %1709 = vmatpush1.bf16.msra.mxu0 %v1684
        %1710 = vmatprep.subr.bf16.mxu0 0
        %1711 = vmatpush1.bf16.msra.mxu0 %v1683
        %1712 = vmatprep.subr.bf16.mxu0 0
        %1713 = vmatpush1.bf16.msra.mxu0 %v1682
        %1714 = vmatprep.subr.bf16.mxu0 0
        %1715 = vmatpush2.bf16.msra.mxu0 0
        %1716 = vmatprep.subr.bf16.mxu0 0
        %1717 = vmatpush2.bf16.msra.mxu0 0
        %1718 = vmatprep.subr.bf16.mxu0 0
        %1719 = vmatpush2.bf16.msra.mxu0 0
        %1720 = vmatprep.subr.bf16.mxu0 0
        %1721 = vmatpush2.bf16.msra.mxu0 0
        %1722 = vmatprep.subr.bf16.mxu0 0
        %1723 = vmatpush2.bf16.msra.mxu0 0
        %1724 = vmatprep.subr.bf16.mxu0 0
        %1725 = vmatpush2.bf16.msra.mxu0 0
        %1726 = vmatprep.subr.bf16.mxu0 0
        %1727 = vmatpush2.bf16.msra.mxu0 0
        %1728 = vmatprep.subr.bf16.mxu0 0
        %1729 = vmatpush2.bf16.msra.mxu0 0
        %1730 = vmatprep.mubr.bf16.mxu0 0
        %1731 = vmatmul.mubr.bf16.gmra.mxu0 %v992
        %v1732 = vpop.f32.mrf.mxu0
        %v1733 = vadd.f32 %v1648, %v1732
        %v1734 = vpop.f32.mrf.mxu0
        %v1735 = vpop.f32.mrf.mxu0
        %v1736 = vadd.f32 %v1648, %v1735
        %v1737 = vpop.f32.mrf.mxu0
        %1738 = vmatprep.mubr.bf16.mxu0 0
        %1739 = vmatmul.mubr.bf16.gmra.mxu0 %v993
        %v1740 = vpop.f32.mrf.mxu0
        %v1741 = vadd.f32 %v1648, %v1740
        %v1742 = vpop.f32.mrf.mxu0
        %v1743 = vpop.f32.mrf.mxu0
        %v1744 = vadd.f32 %v1648, %v1743
        %v1745 = vpop.f32.mrf.mxu0
        %1746 = vmatprep.mubr.bf16.mxu0 0
        %1747 = vmatmul.mubr.bf16.gmra.mxu0 %v994
        %v1748 = vpop.f32.mrf.mxu0
        %v1749 = vadd.f32 %v1648, %v1748
        %v1750 = vpop.f32.mrf.mxu0
        %v1751 = vpop.f32.mrf.mxu0
        %v1752 = vadd.f32 %v1648, %v1751
        %v1753 = vpop.f32.mrf.mxu0
        %1754 = vmatprep.mubr.bf16.mxu0 0
        %1755 = vmatmul.mubr.bf16.gmra.mxu0 %v995
        %v1756 = vpop.f32.mrf.mxu0
        %v1757 = vadd.f32 %v1648, %v1756
        %v1758 = vpop.f32.mrf.mxu0
        %v1759 = vpop.f32.mrf.mxu0
        %v1760 = vadd.f32 %v1648, %v1759
        %v1761 = vpop.f32.mrf.mxu0
        %1762 = vdwg.mxu0
        %v1767 = vunpack.c.l.b16 %v1623
        %v1768 = vunpack.c.l.b16 %v1624
        %v1769 = vunpack.c.l.b16 %v1625
        %v1770 = vunpack.c.l.b16 %v1626
        %v1771 = vpack.c.b16 %v1768, %v1767
        %v1772 = vpack.c.b16 %v1770, %v1769
        %1775 = vmatprep.subr.bf16.mxu0 0
        %1776 = vmatpush1.bf16.msra.mxu0 0
        %1777 = vmatprep.subr.bf16.mxu0 0
        %1778 = vmatpush1.bf16.msra.mxu0 0
        %1779 = vmatprep.subr.bf16.mxu0 0
        %1780 = vmatpush1.bf16.msra.mxu0 0
        %1781 = vmatprep.subr.bf16.mxu0 0
        %1782 = vmatpush1.bf16.msra.mxu0 0
        %1783 = vmatprep.subr.bf16.mxu0 0
        %1784 = vmatpush1.bf16.msra.mxu0 0
        %1785 = vmatprep.subr.bf16.mxu0 0
        %1786 = vmatpush1.bf16.msra.mxu0 0
        %1787 = vmatprep.subr.bf16.mxu0 0
        %1788 = vmatpush1.bf16.msra.mxu0 %v1772
        %1789 = vmatprep.subr.bf16.mxu0 0
        %1790 = vmatpush1.bf16.msra.mxu0 %v1771
        %1791 = vmatprep.subr.bf16.mxu0 0
        %1792 = vmatpush2.bf16.msra.mxu0 0
        %1793 = vmatprep.subr.bf16.mxu0 0
        %1794 = vmatpush2.bf16.msra.mxu0 0
        %1795 = vmatprep.subr.bf16.mxu0 0
        %1796 = vmatpush2.bf16.msra.mxu0 0
        %1797 = vmatprep.subr.bf16.mxu0 0
        %1798 = vmatpush2.bf16.msra.mxu0 0
        %1799 = vmatprep.subr.bf16.mxu0 0
        %1800 = vmatpush2.bf16.msra.mxu0 0
        %1801 = vmatprep.subr.bf16.mxu0 0
        %1802 = vmatpush2.bf16.msra.mxu0 0
        %1803 = vmatprep.subr.bf16.mxu0 0
        %1804 = vmatpush2.bf16.msra.mxu0 0
        %1805 = vmatprep.subr.bf16.mxu0 0
        %1806 = vmatpush2.bf16.msra.mxu0 0
        %1807 = vmatprep.mubr.bf16.mxu0 0
        %1808 = vmatmul.mubr.bf16.gmra.mxu0 %v1149
        %v1809 = vpop.f32.mrf.mxu0
        %v1810 = vadd.f32 %v1733, %v1809
        %v1811 = vpop.f32.mrf.mxu0
        %v1812 = vpop.f32.mrf.mxu0
        %v1813 = vadd.f32 %v1736, %v1812
        %v1814 = vpop.f32.mrf.mxu0
        %1815 = vmatprep.mubr.bf16.mxu0 0
        %1816 = vmatmul.mubr.bf16.gmra.mxu0 %v1152
        %v1817 = vpop.f32.mrf.mxu0
        %v1818 = vadd.f32 %v1741, %v1817
        %v1819 = vpop.f32.mrf.mxu0
        %v1820 = vpop.f32.mrf.mxu0
        %v1821 = vadd.f32 %v1744, %v1820
        %v1822 = vpop.f32.mrf.mxu0
        %1823 = vmatprep.mubr.bf16.mxu0 0
        %1824 = vmatmul.mubr.bf16.gmra.mxu0 %v1155
        %v1825 = vpop.f32.mrf.mxu0
        %v1826 = vadd.f32 %v1749, %v1825
        %v1827 = vpop.f32.mrf.mxu0
        %v1828 = vpop.f32.mrf.mxu0
        %v1829 = vadd.f32 %v1752, %v1828
        %v1830 = vpop.f32.mrf.mxu0
        %1831 = vmatprep.mubr.bf16.mxu0 0
        %1832 = vmatmul.mubr.bf16.gmra.mxu0 %v1158
        %v1833 = vpop.f32.mrf.mxu0
        %v1834 = vadd.f32 %v1757, %v1833
        %v1835 = vpop.f32.mrf.mxu0
        %v1836 = vpop.f32.mrf.mxu0
        %v1837 = vadd.f32 %v1760, %v1836
        %v1838 = vpop.f32.mrf.mxu0
        %1839 = vdwg.mxu0
        %v1840 = vmul.f32 %v1810, %v1615
        %v1841 = vmul.f32 %v1813, %v1616
        %v1842 = vmul.f32 %v1818, %v1617
        %v1843 = vmul.f32 %v1821, %v1618
        %v1844 = vmul.f32 %v1826, %v1619
        %v1845 = vmul.f32 %v1829, %v1620
        %v1846 = vmul.f32 %v1834, %v1621
        %v1847 = vmul.f32 %v1837, %v1622
        %v1848 = vsel %vm779, %v1840, 0.0
        %v1849 = vrot.slane %v1848, 4
        %v1850 = vadd.f32 %v1848, %v1849
        %v1851 = vrot.slane %v1850, 2
        %v1852 = vadd.f32 %v1850, %v1851
        %v1853 = vrot.slane %v1852, 1
        %v1854 = vadd.f32 %v1852, %v1853
        %v1855 = vsel %vm779, %v1841, 0.0
        %v1856 = vrot.slane %v1855, 4
        %v1857 = vadd.f32 %v1855, %v1856
        %v1858 = vrot.slane %v1857, 2
        %v1859 = vadd.f32 %v1857, %v1858
        %v1860 = vrot.slane %v1859, 1
        %v1861 = vadd.f32 %v1859, %v1860
        %v1862 = vsel %vm779, %v1842, 0.0
        %v1863 = vrot.slane %v1862, 4
        %v1864 = vadd.f32 %v1862, %v1863
        %v1865 = vrot.slane %v1864, 2
        %v1866 = vadd.f32 %v1864, %v1865
        %v1867 = vrot.slane %v1866, 1
        %v1868 = vadd.f32 %v1866, %v1867
        %v1869 = vsel %vm779, %v1843, 0.0
        %v1870 = vrot.slane %v1869, 4
        %v1871 = vadd.f32 %v1869, %v1870
        %v1872 = vrot.slane %v1871, 2
        %v1873 = vadd.f32 %v1871, %v1872
        %v1874 = vrot.slane %v1873, 1
        %v1875 = vadd.f32 %v1873, %v1874
        %v1876 = vsel %vm779, %v1844, 0.0
        %v1877 = vrot.slane %v1876, 4
        %v1878 = vadd.f32 %v1876, %v1877
        %v1879 = vrot.slane %v1878, 2
        %v1880 = vadd.f32 %v1878, %v1879
        %v1881 = vrot.slane %v1880, 1
        %v1882 = vadd.f32 %v1880, %v1881
        %v1883 = vsel %vm779, %v1845, 0.0
        %v1884 = vrot.slane %v1883, 4
        %v1885 = vadd.f32 %v1883, %v1884
        %v1886 = vrot.slane %v1885, 2
        %v1887 = vadd.f32 %v1885, %v1886
        %v1888 = vrot.slane %v1887, 1
        %v1889 = vadd.f32 %v1887, %v1888
        %v1890 = vsel %vm779, %v1846, 0.0
        %v1891 = vrot.slane %v1890, 4
        %v1892 = vadd.f32 %v1890, %v1891
        %v1893 = vrot.slane %v1892, 2
        %v1894 = vadd.f32 %v1892, %v1893
        %v1895 = vrot.slane %v1894, 1
        %v1896 = vadd.f32 %v1894, %v1895
        %v1897 = vsel %vm779, %v1847, 0.0
        %v1898 = vrot.slane %v1897, 4
        %v1899 = vadd.f32 %v1897, %v1898
        %v1900 = vrot.slane %v1899, 2
        %v1901 = vadd.f32 %v1899, %v1900
        %v1902 = vrot.slane %v1901, 1
        %v1903 = vadd.f32 %v1901, %v1902
        %v1904 = vpack.c.bf16 %v1854, %v1854
        %v1905 = vpack.c.bf16 %v1861, %v1861
        %v1906 = vpack.c.bf16 %v1868, %v1868
        %v1907 = vpack.c.bf16 %v1875, %v1875
        %v1908 = vpack.c.bf16 %v1882, %v1882
        %v1909 = vpack.c.bf16 %v1889, %v1889
        %v1910 = vpack.c.bf16 %v1896, %v1896
        %v1911 = vpack.c.bf16 %v1903, %v1903
        %v1912 = vld [vmem:[%s16] sm:$0xf]
        %v1913 = vld [vmem:[%s16 + $0x4] sm:$0xf]
        %v1914 = vld [vmem:[%s16 + $0x8] sm:$0xf]
        %v1915 = vld [vmem:[%s16 + $0xc] sm:$0xf]
        %v1916 = vld [vmem:[%s17] sm:$0x1]
        %v1918 = vlaneseq
        %v1919 = vshrl.u32 %v1918, 7
        %v1920 = vsub.s32 0, %v1919
        %v1921 = vrot.slane %v1916, %v1920
        %v1931 = vunpack.c.l.b16 %v1904
        %v1932 = vunpack.c.l.b16 %v1905
        %v1933 = vunpack.c.l.b16 %v1906
        %v1934 = vunpack.c.l.b16 %v1907
        %v1935 = vunpack.c.l.b16 %v1908
        %v1936 = vunpack.c.l.b16 %v1909
        %v1937 = vunpack.c.l.b16 %v1910
        %v1938 = vunpack.c.l.b16 %v1911
        %vm1939 = vcmask 1041409
        %v1940 = vsel %vm1939, %v1932, %v1931
        %vm1941 = vcmask 1042434
        %v1942 = vsel %vm1941, %v1933, %v1940
        %vm1943 = vcmask 1043459
        %v1944 = vsel %vm1943, %v1934, %v1942
        %vm1945 = vcmask 1044484
        %v1946 = vsel %vm1945, %v1935, %v1944
        %vm1947 = vcmask 1045509
        %v1948 = vsel %vm1947, %v1936, %v1946
        %vm1949 = vcmask 1046534
        %v1950 = vsel %vm1949, %v1937, %v1948
        %vm1951 = vcmask 1047559
        %v1952 = vsel %vm1951, %v1938, %v1950
        %v1953 = vpack.c.b16 %v1952, %v1952
        %v1958 = vunpack.c.l.b16 %v1912
        %v1959 = vunpack.c.l.b16 %v1913
        %v1960 = vunpack.c.l.b16 %v1914
        %v1961 = vunpack.c.l.b16 %v1915
        %v1962 = vpack.c.b16 %v1959, %v1958
        %v1963 = vpack.c.b16 %v1961, %v1960
        %v1967 = vsel %vm779, %v1953, 0
        %1969 = vmatprep.subr.bf16.mxu0 0
        %1970 = vmatpush1.bf16.msra.mxu0 0
        %1971 = vmatprep.subr.bf16.mxu0 0
        %1972 = vmatpush1.bf16.msra.mxu0 0
        %1973 = vmatprep.subr.bf16.mxu0 0
        %1974 = vmatpush1.bf16.msra.mxu0 0
        %1975 = vmatprep.subr.bf16.mxu0 0
        %1976 = vmatpush1.bf16.msra.mxu0 0
        %1977 = vmatprep.subr.bf16.mxu0 0
        %1978 = vmatpush1.bf16.msra.mxu0 0
        %1979 = vmatprep.subr.bf16.mxu0 0
        %1980 = vmatpush1.bf16.msra.mxu0 0
        %1981 = vmatprep.subr.bf16.mxu0 0
        %1982 = vmatpush1.bf16.msra.mxu0 %v1963
        %1983 = vmatprep.subr.bf16.mxu0 0
        %1984 = vmatpush1.bf16.msra.mxu0 %v1962
        %1985 = vmatprep.subr.bf16.mxu0 0
        %1986 = vmatpush2.bf16.msra.mxu0 0
        %1987 = vmatprep.subr.bf16.mxu0 0
        %1988 = vmatpush2.bf16.msra.mxu0 0
        %1989 = vmatprep.subr.bf16.mxu0 0
        %1990 = vmatpush2.bf16.msra.mxu0 0
        %1991 = vmatprep.subr.bf16.mxu0 0
        %1992 = vmatpush2.bf16.msra.mxu0 0
        %1993 = vmatprep.subr.bf16.mxu0 0
        %1994 = vmatpush2.bf16.msra.mxu0 0
        %1995 = vmatprep.subr.bf16.mxu0 0
        %1996 = vmatpush2.bf16.msra.mxu0 0
        %1997 = vmatprep.subr.bf16.mxu0 0
        %1998 = vmatpush2.bf16.msra.mxu0 0
        %1999 = vmatprep.subr.bf16.mxu0 0
        %2000 = vmatpush2.bf16.msra.mxu0 0
        %2001 = vmatprep.mubr.bf16.mxu0 0
        %2002 = vmatmul.mubr.bf16.gmra.mxu0 %v1967
        %v2003 = vpop.f32.mrf.mxu0
        %v2004 = vadd.f32 %v1921, %v2003
        %v2005 = vpop.f32.mrf.mxu0
        %v2006 = vpop.f32.mrf.mxu0
        %v2007 = vpop.f32.mrf.mxu0
        %2008 = vdwg.mxu0
        %v2009 = vadd.f32 %v2004, %v778
        %v2010 = vsel %vm779, %v2009, 0.0
        %2011 = vadd.xlane.f32.xlu0 %v2010
        %v2012 = vpop.xlane.xlu0 %2011
        %v2013 = vmul.f32 %v2012, %v783
        %v2014 = vsub.f32 %v2009, %v2013
        %v2015 = vmul.f32 %v2014, %v2014
        %v2016 = vsel %vm779, %v2015, 0.0
        %2017 = vadd.xlane.f32.xlu0 %v2016
        %v2018 = vpop.xlane.xlu0 %2017
        %v2019 = vmul.f32 %v2018, %v783
        %v2020 = vadd.f32 %v2019, 1e-06
        %v2021 = vrsqrt.pop %v2020
        %v2022 = vmul.f32 %v2014, %v2021
        %v2023 = vld [vmem:[%s18] sm:$0x1]
        %v2025 = vlaneseq
        %v2026 = vshrl.u32 %v2025, 7
        %v2027 = vsub.s32 0, %v2026
        %v2028 = vrot.slane %v2023, %v2027
        %v2030 = vmul.f32 %v2022, %v2028
        %v2031 = vld [vmem:[%s19] sm:$0x1]
        %v2033 = vlaneseq
        %v2034 = vshrl.u32 %v2033, 7
        %v2035 = vsub.s32 0, %v2034
        %v2036 = vrot.slane %v2031, %v2035
        %v2038 = vadd.f32 %v2030, %v2036
        %v2039 = vpack.c.bf16 %v2038, %v2038
        %v2040 = vld [vmem:[%s20] sm:$0xf]
        %v2041 = vld [vmem:[%s20 + $0x4] sm:$0xf]
        %v2042 = vld [vmem:[%s20 + $0x8] sm:$0xf]
        %v2043 = vld [vmem:[%s20 + $0xc] sm:$0xf]
        %v2044 = vld [vmem:[%s21] sm:$0x1]
        %v2046 = vlaneseq
        %v2047 = vshrl.u32 %v2046, 7
        %v2048 = vsub.s32 0, %v2047
        %v2049 = vrot.slane %v2044, %v2048
        %v2055 = vunpack.c.l.b16 %v2040
        %v2056 = vunpack.c.l.b16 %v2041
        %v2057 = vunpack.c.l.b16 %v2042
        %v2058 = vunpack.c.l.b16 %v2043
        %v2059 = vpack.c.b16 %v2056, %v2055
        %v2060 = vpack.c.b16 %v2058, %v2057
        %v2064 = vsel %vm779, %v2039, 0
        %2066 = vmatprep.subr.bf16.mxu0 0
        %2067 = vmatpush1.bf16.msra.mxu0 0
        %2068 = vmatprep.subr.bf16.mxu0 0
        %2069 = vmatpush1.bf16.msra.mxu0 0
        %2070 = vmatprep.subr.bf16.mxu0 0
        %2071 = vmatpush1.bf16.msra.mxu0 0
        %2072 = vmatprep.subr.bf16.mxu0 0
        %2073 = vmatpush1.bf16.msra.mxu0 0
        %2074 = vmatprep.subr.bf16.mxu0 0
        %2075 = vmatpush1.bf16.msra.mxu0 0
        %2076 = vmatprep.subr.bf16.mxu0 0
        %2077 = vmatpush1.bf16.msra.mxu0 0
        %2078 = vmatprep.subr.bf16.mxu0 0
        %2079 = vmatpush1.bf16.msra.mxu0 %v2060
        %2080 = vmatprep.subr.bf16.mxu0 0
        %2081 = vmatpush1.bf16.msra.mxu0 %v2059
        %2082 = vmatprep.subr.bf16.mxu0 0
        %2083 = vmatpush2.bf16.msra.mxu0 0
        %2084 = vmatprep.subr.bf16.mxu0 0
        %2085 = vmatpush2.bf16.msra.mxu0 0
        %2086 = vmatprep.subr.bf16.mxu0 0
        %2087 = vmatpush2.bf16.msra.mxu0 0
        %2088 = vmatprep.subr.bf16.mxu0 0
        %2089 = vmatpush2.bf16.msra.mxu0 0
        %2090 = vmatprep.subr.bf16.mxu0 0
        %2091 = vmatpush2.bf16.msra.mxu0 0
        %2092 = vmatprep.subr.bf16.mxu0 0
        %2093 = vmatpush2.bf16.msra.mxu0 0
        %2094 = vmatprep.subr.bf16.mxu0 0
        %2095 = vmatpush2.bf16.msra.mxu0 0
        %2096 = vmatprep.subr.bf16.mxu0 0
        %2097 = vmatpush2.bf16.msra.mxu0 0
        %2098 = vmatprep.mubr.bf16.mxu0 0
        %2099 = vmatmul.mubr.bf16.gmra.mxu0 %v2064
        %v2100 = vpop.f32.mrf.mxu0
        %v2101 = vadd.f32 %v2049, %v2100
        %v2102 = vpop.f32.mrf.mxu0
        %v2103 = vpop.f32.mrf.mxu0
        %v2104 = vpop.f32.mrf.mxu0
        %2105 = vdwg.mxu0
        %v2106 = vmax.f32 %v2101, 0.0
        %v2107 = vpack.c.bf16 %v2106, %v2106
        %v2108 = vld [vmem:[%s22] sm:$0xf]
        %v2109 = vld [vmem:[%s22 + $0x4] sm:$0xf]
        %v2110 = vld [vmem:[%s22 + $0x8] sm:$0xf]
        %v2111 = vld [vmem:[%s22 + $0xc] sm:$0xf]
        %v2112 = vld [vmem:[%s22 + $0x10] sm:$0xf]
        %v2113 = vld [vmem:[%s22 + $0x14] sm:$0xf]
        %v2114 = vld [vmem:[%s22 + $0x18] sm:$0xf]
        %v2115 = vld [vmem:[%s22 + $0x1c] sm:$0xf]
        %v2116 = vld [vmem:[%s23] sm:$0x1]
        %v2118 = vlaneseq
        %v2119 = vshrl.u32 %v2118, 7
        %v2120 = vsub.s32 0, %v2119
        %v2121 = vrot.slane %v2116, %v2120
        %v2131 = vunpack.c.l.b16 %v2108
        %v2132 = vunpack.c.l.b16 %v2109
        %v2133 = vunpack.c.l.b16 %v2110
        %v2134 = vunpack.c.l.b16 %v2111
        %v2135 = vunpack.c.l.b16 %v2112
        %v2136 = vunpack.c.l.b16 %v2113
        %v2137 = vunpack.c.l.b16 %v2114
        %v2138 = vunpack.c.l.b16 %v2115
        %v2139 = vpack.c.b16 %v2132, %v2131
        %v2140 = vpack.c.b16 %v2134, %v2133
        %v2141 = vpack.c.b16 %v2136, %v2135
        %v2142 = vpack.c.b16 %v2138, %v2137
        %vm2147 = vcmask 523264
        %v2149 = vsel %vm2147, %v2107, 0
        %2151 = vmatprep.subr.bf16.mxu0 0
        %2152 = vmatpush1.bf16.msra.mxu0 0
        %2153 = vmatprep.subr.bf16.mxu0 0
        %2154 = vmatpush1.bf16.msra.mxu0 0
        %2155 = vmatprep.subr.bf16.mxu0 0
        %2156 = vmatpush1.bf16.msra.mxu0 0
        %2157 = vmatprep.subr.bf16.mxu0 0
        %2158 = vmatpush1.bf16.msra.mxu0 0
        %2159 = vmatprep.subr.bf16.mxu0 0
        %2160 = vmatpush1.bf16.msra.mxu0 %v2142
        %2161 = vmatprep.subr.bf16.mxu0 0
        %2162 = vmatpush1.bf16.msra.mxu0 %v2141
        %2163 = vmatprep.subr.bf16.mxu0 0
        %2164 = vmatpush1.bf16.msra.mxu0 %v2140
        %2165 = vmatprep.subr.bf16.mxu0 0
        %2166 = vmatpush1.bf16.msra.mxu0 %v2139
        %2167 = vmatprep.subr.bf16.mxu0 0
        %2168 = vmatpush2.bf16.msra.mxu0 0
        %2169 = vmatprep.subr.bf16.mxu0 0
        %2170 = vmatpush2.bf16.msra.mxu0 0
        %2171 = vmatprep.subr.bf16.mxu0 0
        %2172 = vmatpush2.bf16.msra.mxu0 0
        %2173 = vmatprep.subr.bf16.mxu0 0
        %2174 = vmatpush2.bf16.msra.mxu0 0
        %2175 = vmatprep.subr.bf16.mxu0 0
        %2176 = vmatpush2.bf16.msra.mxu0 0
        %2177 = vmatprep.subr.bf16.mxu0 0
        %2178 = vmatpush2.bf16.msra.mxu0 0
        %2179 = vmatprep.subr.bf16.mxu0 0
        %2180 = vmatpush2.bf16.msra.mxu0 0
        %2181 = vmatprep.subr.bf16.mxu0 0
        %2182 = vmatpush2.bf16.msra.mxu0 0
        %2183 = vmatprep.mubr.bf16.mxu0 0
        %2184 = vmatmul.mubr.bf16.gmra.mxu0 %v2149
        %v2185 = vpop.f32.mrf.mxu0
        %v2186 = vadd.f32 %v2121, %v2185
        %v2187 = vpop.f32.mrf.mxu0
        %v2188 = vpop.f32.mrf.mxu0
        %v2189 = vpop.f32.mrf.mxu0
        %2190 = vdwg.mxu0
        %v2191 = vadd.f32 %v2186, %v2009
        %2192 = vst.msk [vmem:[%s760] sm:$0xff] %vm779, %v2191
        %s2193 = sand.u32 %s565, 1
        %s2194 = scalar_lea.sflag [#allocation3], %s2193
        %s2195 = sand.u32 %s565, 1
        %s2196 = smul.addr %s2195, 8
        %s2197 = scalar_lea.vmem [#allocation2], %s2196
        // Predicated region
        $region117: #{tpu_custom_call.1} parent=115 // pred_check
          %p2198 = pneg %p575
        $region118: #{tpu_custom_call.1} parent=115 // pred_check_branch
          %2200 = sbr.rel (%p2198) target = $region120
        $region119: #{tpu_custom_call.1} parent=115 // pred_region
          %s2202 = ssub.s32 128, 128
          %2203 = vsyncadd %s2194, %s2202
          %s2204 = smul.addr %s38, 128
          %s2205 = scalar_lea.hbm %s24, %s2204
          %s2207 = sshll.u32 %s2197, 4
          %s2208 = int_to_ptr.vmem [resolvable:$true] %s2207
          %2210 = dma.vmem_to_hbm [thread:$0]  %s2208, 128, %s2205, %s2194
        $region120: #{tpu_custom_call.1} parent=115 // pred_fallthru
          _
      $region116: #{tpu_custom_call.1} parent=5 // pred_fallthru
        _
      %p2211 = scmp.le.s32.totalorder 2, %s33
      // Predicated region
      $region121: #{tpu_custom_call.1} parent=5 // pred_check
        %p2212 = pneg %p2211
      $region122: #{tpu_custom_call.1} parent=5 // pred_check_branch
        %2214 = sbr.rel (%p2212) target = $region124
      $region123: #{tpu_custom_call.1} parent=5 // pred_region
        %s2215 = ssub.s32 %s33, 2
        // Predicated region
        $region125: #{tpu_custom_call.1} parent=123 // pred_check
          %p2216 = pneg %p581
        $region126: #{tpu_custom_call.1} parent=123 // pred_check_branch
          %2218 = sbr.rel (%p2216) target = $region128
        $region127: #{tpu_custom_call.1} parent=123 // pred_region
          %s2219 = sand.u32 %s566, 1
          %s2220 = scalar_lea.sflag [#allocation3], %s2219
          %s2221 = sand.u32 %s566, 1
          %s2222 = smul.addr %s2221, 8
          %s2223 = scalar_lea.vmem [#allocation2], %s2222
          %2224 = dma.done %s2220, 128
        $region128: #{tpu_custom_call.1} parent=123 // pred_fallthru
          _
      $region124: #{tpu_custom_call.1} parent=5 // pred_fallthru
        _
    $region6: #{tpu_custom_call.1} parent=1 // loop_footer
      %s37 = sadd.s32 1, %s33
    $region7: #{tpu_custom_call.1} parent=1 // loop_footer_branch
      %32 = sbr.rel target = $region3
    $region8: #{tpu_custom_call.1} parent=1 // loop_exit
      _
    %2225 = vsyncpa [#allocation3], 1
    %s2226 = scalar_lea.sflag [#allocation3], 1
    %2227 = vsyncpa %s2226, 1

</llo_original>
